<compile_context>
chip_gen: v7x
topology: tpu7x:2x2x1
jax: 0.10.0
libtpu: 0.0.40
codegen_flags: <defaults>
</compile_context>

<pallas_src>
import functools
import math

import jax
import jax.numpy as jnp
from jax import lax
from jax.experimental import pallas as pl
from jax.experimental.pallas import tpu as pltpu


def _attention_kernel(q_ref, k_ref, v_ref, o_ref, m_sc, l_sc, acc_sc, *,
                      scale, lk_valid, t_lk, need_mask, exp_dtype):
    kv_i = pl.program_id(2)

    @pl.when(kv_i == 0)
    def _init():
        m_sc[...] = jnp.full(m_sc.shape, -jnp.inf, jnp.float32)
        l_sc[...] = jnp.zeros(l_sc.shape, jnp.float32)
        acc_sc[...] = jnp.zeros(acc_sc.shape, jnp.float32)

    # Keep q/k in their native dtype (bf16 stays bf16 -> fast MXU path); fold
    # the 1/sqrt(D) scale into q as a native-dtype multiply.
    q = q_ref[...] * scale                                  # [TB, TLq, D]
    k = k_ref[...]                                          # [TB, TLk, D]
    s = jnp.einsum("bqd,bkd->bqk", q, k, preferred_element_type=jnp.float32)

    if need_mask:
        # Last kv block may contain zero-padded columns: force them to -inf so
        # they get zero softmax weight.
        col = kv_i * t_lk + lax.broadcasted_iota(jnp.int32, s.shape, 2)
        s = jnp.where(col < lk_valid, s, -jnp.inf)

    # Online (flash-style) softmax accumulation across kv blocks.
    m_prev = m_sc[...]
    m_new = jnp.maximum(m_prev, jnp.max(s, axis=-1, keepdims=True))
    alpha = jnp.exp(m_prev - m_new)
    # exp in the compute dtype (bf16 EUP path on v6e/v7x for bf16 inputs); the
    # running denominator is still accumulated in f32.
    p = jnp.exp((s - m_new).astype(exp_dtype))              # [TB, TLq, TLk]
    l_sc[...] = alpha * l_sc[...] + jnp.sum(
        p, axis=-1, dtype=jnp.float32, keepdims=True)
    acc_sc[...] = alpha * acc_sc[...] + jnp.einsum(
        "bqk,bkd->bqd", p.astype(v_ref.dtype), v_ref[...],
        preferred_element_type=jnp.float32)
    m_sc[...] = m_new

    @pl.when(kv_i == pl.num_programs(2) - 1)
    def _finalize():
        # Exact divide: runs once per output block (O(Lq*Dv)), negligible cost,
        # keeps parity with the f32 reference.
        # TODO(synk): lane-dense repack of the output to [TLq, TB*Dv] when
        # Dv < 128 (needs an in-kernel transpose + lane-merge reshape).
        o_ref[...] = (acc_sc[...] / l_sc[...]).astype(o_ref.dtype)


def _chip_info():
    """(physical VMEM bytes, inferred TensorCores/chip); conservative fallback."""
    vmem_cap = 64 * 1024 * 1024
    try:
        info = pltpu.get_tpu_info()
        cap = getattr(info, "vmem_capacity_bytes", None)
        if cap:
            vmem_cap = int(cap)
    except Exception:
        pass
    # v7x: 64 MiB VMEM per TC, 2 TCs/chip; v5e/v6e: 128 MiB, 1 TC.
    num_cores = 2 if vmem_cap <= 64 * 1024 * 1024 else 1
    return vmem_cap, num_cores


def _pick_seq_block(n, sub, max_tile=512):
    """Sequence tile: full dim if small; else largest sub-aligned divisor
    <= max_tile; else max_tile with zero padding (caller masks / slices)."""
    if n <= max_tile:
        return n, False
    top = max_tile - max_tile % sub
    for t in range(top, sub - 1, -sub):
        if n % t == 0:
            return t, False
    return top, True


def _pick_batch_block(b, nq, fits_fn, min_parallel):
    divisors = [t for t in range(1, b + 1) if b % t == 0]
    fits = [t for t in divisors if fits_fn(t)] or [1]
    if min_parallel > 1:
        multi = [t for t in fits if (b // t) * nq >= min_parallel]
        if multi:
            return max(multi)
    return max(fits)


def _make_kv_spec(block_shape, index_map, buffers):
    if buffers > 2:
        try:
            return pl.BlockSpec(block_shape, index_map,
                                pipeline_mode=pl.Buffered(buffers))
        except TypeError:
            pass  # BlockSpec without pipeline_mode support: default 2 buffers.
    return pl.BlockSpec(block_shape, index_map)


def _pad_axis1(x, new_len):
    pad = new_len - x.shape[1]
    if pad == 0:
        return x
    return jnp.pad(x, ((0, 0), (0, pad), (0, 0)))


def dot_attention_v2(query, key, value):
    """query/key/value: [B, 1, L, 1, D]. Returns [B, Lq, Dv] (DotAttentionV2.forward)."""
    assert query.ndim == 5 and key.ndim == 5 and value.ndim == 5
    assert query.shape[1] == 1 and query.shape[3] == 1
    assert key.shape[1] == 1 and key.shape[3] == 1
    assert value.shape[1] == 1 and value.shape[3] == 1

    q = query[:, 0, :, 0, :]
    k = key[:, 0, :, 0, :]
    v = value[:, 0, :, 0, :]
    B, Lq, D = q.shape
    _, Lk, Dk = k.shape
    _, _, Dv = v.shape
    assert Dk == D and k.shape[0] == B and v.shape[:2] == (B, Lk)
    assert q.dtype == k.dtype == v.dtype
    # TODO(synk): torch's bare .squeeze() changes semantics when Lq==1 or Lk==1;
    # only the non-degenerate case is supported here.
    assert Lq > 1 and Lk > 1

    scale = 1.0 / math.sqrt(D)                       # V2 scales by sqrt(feature dim)
    itemsize = jnp.dtype(q.dtype).itemsize
    sub = max(8, 8 * max(1, 4 // itemsize))          # sublane pack: 8 f32 / 16 bf16 / 32 int8

    vmem_cap, num_cores = _chip_info()
    vmem_limit = min((3 * vmem_cap) // 4, 96 * 1024 * 1024)   # 96 MiB v5e/v6e, 48 MiB v7x
    budget = (vmem_limit * 3) // 5                            # headroom for compiler temps

    t_lk, pad_k = _pick_seq_block(Lk, sub, 512)
    t_lq, pad_q = _pick_seq_block(Lq, sub, 512)
    Lk_p = pl.cdiv(Lk, t_lk) * t_lk
    Lq_p = pl.cdiv(Lq, t_lq) * t_lq
    nk = Lk_p // t_lk
    nq = Lq_p // t_lq

    # Deeper k/v buffering when per-kv-step compute is short and there are
    # enough kv steps to hide DMA latency behind (mainly v7x's fast HBM).
    kv_buffers = 3 if (nk >= 3 and t_lq <= 128 and D <= 128) else 2

    def fits(tb):
        io = itemsize * tb * (2 * t_lq * D                    # q (double-buffered)
                              + kv_buffers * t_lk * (D + Dv)  # k + v
                              + 2 * t_lq * Dv)                # output
        scr = 4 * tb * t_lq * (Dv + 2)                        # f32 acc + m + l scratch
        tmp = tb * t_lq * t_lk * (2 * 4 + itemsize)           # live s, p (f32) + low-prec p
        return io + scr + tmp <= budget

    # Prefer >=2 parallel grid steps only on multi-core chips (v7x); single-TC
    # v5e/v6e just take the largest batch slab that fits.
    min_parallel = 2 if num_cores >= 2 else 1
    tb = _pick_batch_block(B, nq, fits, min_parallel)

    q_p = _pad_axis1(q, Lq_p)
    k_p = _pad_axis1(k, Lk_p)
    v_p = _pad_axis1(v, Lk_p)

    exp_dtype = jnp.bfloat16 if q.dtype == jnp.bfloat16 else jnp.float32

    # TODO(synk): if production shapes really have D=Dv~32, pack batch along
    # the contraction / output-lane axis to raise MXU utilization.
    kernel = functools.partial(
        _attention_kernel, scale=scale, lk_valid=Lk, t_lk=t_lk,
        need_mask=pad_k, exp_dtype=exp_dtype)

    out = pl.pallas_call(
        kernel,
        out_shape=jax.ShapeDtypeStruct((B, Lq_p, Dv), q.dtype),
        grid_spec=pltpu.PrefetchScalarGridSpec(
            num_scalar_prefetch=0,
            grid=(B // tb, nq, nk),        # reduction (kv) axis last, "arbitrary"
            in_specs=[
                pl.BlockSpec((tb, t_lq, D), lambda bi, qi, ki: (bi, qi, 0)),
                _make_kv_spec((tb, t_lk, D), lambda bi, qi, ki: (bi, ki, 0), kv_buffers),
                _make_kv_spec((tb, t_lk, Dv), lambda bi, qi, ki: (bi, ki, 0), kv_buffers),
            ],
            out_specs=pl.BlockSpec((tb, t_lq, Dv), lambda bi, qi, ki: (bi, qi, 0)),
            scratch_shapes=[
                pltpu.VMEM((tb, t_lq, 1), jnp.float32),    # running max m
                pltpu.VMEM((tb, t_lq, 1), jnp.float32),    # running denom l
                pltpu.VMEM((tb, t_lq, Dv), jnp.float32),   # running numerator acc
            ],
        ),
        compiler_params=pltpu.CompilerParams(
            dimension_semantics=("parallel", "parallel", "arbitrary"),
            vmem_limit_bytes=int(vmem_limit),
        ),
    )(q_p, k_p, v_p)

    if Lq_p != Lq:
        out = out[:, :Lq, :]
    return out


def reference(query, key, value):
    """Pure-JAX transcription of the original PyTorch forward (exact semantics)."""
    transb = jnp.transpose(key, (0, 1, 3, 2, 4))[..., None]        # [B,1,1,Lk,D,1]
    q6 = query[:, :, :, :, None, :]                                # [B,1,Lq,1,1,D]
    shape = math.sqrt(q6.shape[-1])
    score = jnp.squeeze(jnp.matmul(q6, transb) / shape)            # [B,Lq,Lk]
    if score.ndim == 2:
        score = score[None, :, :]
    sm = jax.nn.softmax(score, axis=-1)[:, :, None, :]             # [B,Lq,1,Lk]
    val = jnp.transpose(jnp.squeeze(value, axis=1), (0, 2, 1, 3))  # [B,1,Lk,Dv]
    out = jnp.matmul(sm, val)                                      # [B,Lq,1,Dv]
    return jnp.squeeze(out, axis=-2)                               # [B,Lq,Dv]


if __name__ == "__main__":
    # DotAttentionV2 has no learnable parameters; only q/k/v inputs are needed.
    root = jax.random.PRNGKey(0)
    kq, kk, kv = jax.random.split(root, 3)

    # Shapes implied by the forward: [B, 1, L, 1, D].
    B, L, D = 8, 16, 32
    query = jax.random.normal(kq, (B, 1, L, 1, D), dtype=jnp.float32)
    key = jax.random.normal(kk, (B, 1, L, 1, D), dtype=jnp.float32)
    value = jax.random.normal(kv, (B, 1, L, 1, D), dtype=jnp.float32)

    out = dot_attention_v2(query, key, value)
    out = jax.block_until_ready(out)

    ref = reference(query, key, value)
    assert out.shape == ref.shape, (out.shape, ref.shape)
    # Tolerance covers MXU-vs-XLA default-precision matmul differences.
    assert jnp.allclose(out, ref, atol=2e-3, rtol=2e-3), "mismatch vs reference"

    print("KERNEL_OK")
</pallas_src>

<mosaic_0001>
module attributes {stable_mosaic.version = 11 : i64} {
  func.func @_attention_kernel(%arg0: i32, %arg1: i32, %arg2: i32, %arg3: memref<4x16x32xf32, #tpu.memory_space<vmem>>, %arg4: memref<4x16x32xf32, #tpu.memory_space<vmem>>, %arg5: memref<4x16x32xf32, #tpu.memory_space<vmem>>, %arg6: memref<4x16x32xf32, #tpu.memory_space<vmem>>, %arg7: memref<4x16x1xf32, #tpu.memory_space<vmem>>, %arg8: memref<4x16x1xf32, #tpu.memory_space<vmem>>, %arg9: memref<4x16x32xf32, #tpu.memory_space<vmem>>) attributes {dimension_semantics = [#tpu.dimension_semantics<parallel>, #tpu.dimension_semantics<parallel>, #tpu.dimension_semantics<arbitrary>], iteration_bounds = array<i64: 2, 1, 1>, scalar_prefetch = 0 : i64, scratch_operands = 3 : i64, tpu.core_type = #tpu.core_type<tc>, window_params = [{transform_indices = @transform_0, window_bounds = array<i64: 4, 16, 32>}, {transform_indices = @transform_1, window_bounds = array<i64: 4, 16, 32>}, {transform_indices = @transform_2, window_bounds = array<i64: 4, 16, 32>}, {transform_indices = @transform_3, window_bounds = array<i64: 4, 16, 32>}]} {
    %c0_i32 = arith.constant 0 : i32
    %0 = arith.cmpi eq, %arg2, %c0_i32 : i32
    %1 = arith.extui %0 : i1 to i32
    %c0_i32_0 = arith.constant 0 : i32
    %2 = arith.cmpi ne, %1, %c0_i32_0 : i32
    scf.if %2 {
      %cst_33 = arith.constant 0xFF800000 : f32
      %34 = vector.broadcast %cst_33 : f32 to vector<4x16x1xf32>
      %c0_34 = arith.constant 0 : index
      %c0_35 = arith.constant 0 : index
      %c0_36 = arith.constant 0 : index
      %35 = vector.load %arg7[%c0_34, %c0_35, %c0_36] : memref<4x16x1xf32, #tpu.memory_space<vmem>>, vector<4x16x1xf32>
      tpu.vector_store %arg7[%c0_34, %c0_35, %c0_36], %34 {strides = array<i32>} : memref<4x16x1xf32, #tpu.memory_space<vmem>>, vector<4x16x1xf32>,
      %cst_37 = arith.constant 0.000000e+00 : f32
      %36 = vector.broadcast %cst_37 : f32 to vector<4x16x1xf32>
      %c0_38 = arith.constant 0 : index
      %c0_39 = arith.constant 0 : index
      %c0_40 = arith.constant 0 : index
      %37 = vector.load %arg8[%c0_38, %c0_39, %c0_40] : memref<4x16x1xf32, #tpu.memory_space<vmem>>, vector<4x16x1xf32>
      tpu.vector_store %arg8[%c0_38, %c0_39, %c0_40], %36 {strides = array<i32>} : memref<4x16x1xf32, #tpu.memory_space<vmem>>, vector<4x16x1xf32>,
      %cst_41 = arith.constant 0.000000e+00 : f32
      %38 = vector.broadcast %cst_41 : f32 to vector<4x16x32xf32>
      %c0_42 = arith.constant 0 : index
      %c0_43 = arith.constant 0 : index
      %c0_44 = arith.constant 0 : index
      %39 = vector.load %arg9[%c0_42, %c0_43, %c0_44] : memref<4x16x32xf32, #tpu.memory_space<vmem>>, vector<4x16x32xf32>
      tpu.vector_store %arg9[%c0_42, %c0_43, %c0_44], %38 {strides = array<i32>} : memref<4x16x32xf32, #tpu.memory_space<vmem>>, vector<4x16x32xf32>,
    } else {
    }
    %c0 = arith.constant 0 : index
    %c0_1 = arith.constant 0 : index
    %c0_2 = arith.constant 0 : index
    %3 = vector.load %arg3[%c0, %c0_1, %c0_2] : memref<4x16x32xf32, #tpu.memory_space<vmem>>, vector<4x16x32xf32>
    %cst = arith.constant 0.176776692 : f32
    %4 = vector.broadcast %cst : f32 to vector<4x16x32xf32>
    %5 = arith.mulf %3, %4 : vector<4x16x32xf32>
    %c0_3 = arith.constant 0 : index
    %c0_4 = arith.constant 0 : index
    %c0_5 = arith.constant 0 : index
    %6 = vector.load %arg4[%c0_3, %c0_4, %c0_5] : memref<4x16x32xf32, #tpu.memory_space<vmem>>, vector<4x16x32xf32>
    "tpu.trace_start"() <{level = 10 : i32, message = "bqd,bkd->bqk"}> : () -> ()
    %cst_6 = arith.constant dense<0.000000e+00> : vector<4x16x16xf32>
    %7 = tpu.matmul %5, %6, %cst_6 {dimension_numbers = #tpu.dot_dimension_numbers<[2], [2], [1], [1], [0, 0, 0, 1, 1, 1], [0], [0]>} : vector<4x16x32xf32>, vector<4x16x32xf32>, vector<4x16x16xf32> -> vector<4x16x16xf32>
    "tpu.trace_stop"() : () -> ()
    %c0_7 = arith.constant 0 : index
    %c0_8 = arith.constant 0 : index
    %c0_9 = arith.constant 0 : index
    %8 = vector.load %arg7[%c0_7, %c0_8, %c0_9] : memref<4x16x1xf32, #tpu.memory_space<vmem>>, vector<4x16x1xf32>
    %cst_10 = arith.constant dense<0xFF800000> : vector<4x16xf32>
    %9 = vector.multi_reduction <maximumf>, %7, %cst_10 [2] : vector<4x16x16xf32> to vector<4x16xf32>
    %10 = vector.shape_cast %9 : vector<4x16xf32> to vector<4x16x1xf32>
    %11 = arith.maximumf %8, %10 : vector<4x16x1xf32>
    %12 = arith.subf %8, %11 : vector<4x16x1xf32>
    %13 = math.exp %12 : vector<4x16x1xf32>
    %14 = vector.broadcast %11 : vector<4x16x1xf32> to vector<4x16x16xf32>
    %15 = arith.subf %7, %14 : vector<4x16x16xf32>
    %16 = math.exp %15 : vector<4x16x16xf32>
    %c0_11 = arith.constant 0 : index
    %c0_12 = arith.constant 0 : index
    %c0_13 = arith.constant 0 : index
    %17 = vector.load %arg8[%c0_11, %c0_12, %c0_13] : memref<4x16x1xf32, #tpu.memory_space<vmem>>, vector<4x16x1xf32>
    %18 = arith.mulf %13, %17 : vector<4x16x1xf32>
    %cst_14 = arith.constant dense<0.000000e+00> : vector<4x16xf32>
    %19 = vector.multi_reduction <add>, %16, %cst_14 [2] : vector<4x16x16xf32> to vector<4x16xf32>
    %20 = vector.shape_cast %19 : vector<4x16xf32> to vector<4x16x1xf32>
    %21 = arith.addf %18, %20 : vector<4x16x1xf32>
    %c0_15 = arith.constant 0 : index
    %c0_16 = arith.constant 0 : index
    %c0_17 = arith.constant 0 : index
    %22 = vector.load %arg8[%c0_15, %c0_16, %c0_17] : memref<4x16x1xf32, #tpu.memory_space<vmem>>, vector<4x16x1xf32>
    tpu.vector_store %arg8[%c0_15, %c0_16, %c0_17], %21 {strides = array<i32>} : memref<4x16x1xf32, #tpu.memory_space<vmem>>, vector<4x16x1xf32>,
    %c0_18 = arith.constant 0 : index
    %c0_19 = arith.constant 0 : index
    %c0_20 = arith.constant 0 : index
    %23 = vector.load %arg9[%c0_18, %c0_19, %c0_20] : memref<4x16x32xf32, #tpu.memory_space<vmem>>, vector<4x16x32xf32>
    %24 = vector.broadcast %13 : vector<4x16x1xf32> to vector<4x16x32xf32>
    %25 = arith.mulf %24, %23 : vector<4x16x32xf32>
    %c0_21 = arith.constant 0 : index
    %c0_22 = arith.constant 0 : index
    %c0_23 = arith.constant 0 : index
    %26 = vector.load %arg5[%c0_21, %c0_22, %c0_23] : memref<4x16x32xf32, #tpu.memory_space<vmem>>, vector<4x16x32xf32>
    "tpu.trace_start"() <{level = 10 : i32, message = "bqk,bkd->bqd"}> : () -> ()
    %cst_24 = arith.constant dense<0.000000e+00> : vector<4x16x32xf32>
    %27 = tpu.matmul %16, %26, %cst_24 {dimension_numbers = #tpu.dot_dimension_numbers<[2], [1], [1], [2], [0, 0, 0, 1, 1, 2], [0], [0]>} : vector<4x16x16xf32>, vector<4x16x32xf32>, vector<4x16x32xf32> -> vector<4x16x32xf32>
    "tpu.trace_stop"() : () -> ()
    %28 = arith.addf %25, %27 : vector<4x16x32xf32>
    %c0_25 = arith.constant 0 : index
    %c0_26 = arith.constant 0 : index
    %c0_27 = arith.constant 0 : index
    %29 = vector.load %arg9[%c0_25, %c0_26, %c0_27] : memref<4x16x32xf32, #tpu.memory_space<vmem>>, vector<4x16x32xf32>
    tpu.vector_store %arg9[%c0_25, %c0_26, %c0_27], %28 {strides = array<i32>} : memref<4x16x32xf32, #tpu.memory_space<vmem>>, vector<4x16x32xf32>,
    %c0_28 = arith.constant 0 : index
    %c0_29 = arith.constant 0 : index
    %c0_30 = arith.constant 0 : index
    %30 = vector.load %arg7[%c0_28, %c0_29, %c0_30] : memref<4x16x1xf32, #tpu.memory_space<vmem>>, vector<4x16x1xf32>
    tpu.vector_store %arg7[%c0_28, %c0_29, %c0_30], %11 {strides = array<i32>} : memref<4x16x1xf32, #tpu.memory_space<vmem>>, vector<4x16x1xf32>,
    %c0_i32_31 = arith.constant 0 : i32
    %31 = arith.cmpi eq, %arg2, %c0_i32_31 : i32
    %32 = arith.extui %31 : i1 to i32
    %c0_i32_32 = arith.constant 0 : i32
    %33 = arith.cmpi ne, %32, %c0_i32_32 : i32
    scf.if %33 {
      %c0_33 = arith.constant 0 : index
      %c0_34 = arith.constant 0 : index
      %c0_35 = arith.constant 0 : index
      %34 = vector.load %arg9[%c0_33, %c0_34, %c0_35] : memref<4x16x32xf32, #tpu.memory_space<vmem>>, vector<4x16x32xf32>
      %c0_36 = arith.constant 0 : index
      %c0_37 = arith.constant 0 : index
      %c0_38 = arith.constant 0 : index
      %35 = vector.load %arg8[%c0_36, %c0_37, %c0_38] : memref<4x16x1xf32, #tpu.memory_space<vmem>>, vector<4x16x1xf32>
      %36 = vector.broadcast %35 : vector<4x16x1xf32> to vector<4x16x32xf32>
      %37 = arith.divf %34, %36 : vector<4x16x32xf32>
      %c0_39 = arith.constant 0 : index
      %c0_40 = arith.constant 0 : index
      %c0_41 = arith.constant 0 : index
      %38 = vector.load %arg6[%c0_39, %c0_40, %c0_41] : memref<4x16x32xf32, #tpu.memory_space<vmem>>, vector<4x16x32xf32>
      tpu.vector_store %arg6[%c0_39, %c0_40, %c0_41], %37 {strides = array<i32>} : memref<4x16x32xf32, #tpu.memory_space<vmem>>, vector<4x16x32xf32>,
    } else {
    }
    return
  }
  func.func @transform_0(%arg0: i32, %arg1: i32, %arg2: i32) -> (i32, i32, i32) {
    %c0_i32 = arith.constant 0 : i32
    %c0_i32_0 = arith.constant 0 : i32
    return %arg0, %arg1, %c0_i32 : i32, i32, i32
  }
  func.func @transform_1(%arg0: i32, %arg1: i32, %arg2: i32) -> (i32, i32, i32) {
    %c0_i32 = arith.constant 0 : i32
    %c0_i32_0 = arith.constant 0 : i32
    return %arg0, %arg2, %c0_i32 : i32, i32, i32
  }
  func.func @transform_2(%arg0: i32, %arg1: i32, %arg2: i32) -> (i32, i32, i32) {
    %c0_i32 = arith.constant 0 : i32
    %c0_i32_0 = arith.constant 0 : i32
    return %arg0, %arg2, %c0_i32 : i32, i32, i32
  }
  func.func @transform_3(%arg0: i32, %arg1: i32, %arg2: i32) -> (i32, i32, i32) {
    %c0_i32 = arith.constant 0 : i32
    %c0_i32_0 = arith.constant 0 : i32
    return %arg0, %arg1, %c0_i32 : i32, i32, i32
  }
}

</mosaic_0001>

<llo_original>
// kernel: tpu_custom_call.1
$region0: #{tpu_custom_call.1}
  #allocation0 [shape = 'u32[]', space=smem, size = 0x4, offset = 0x4, fixed_abs, tag = 'smem constant byte address 0x4 - core index']
  #allocation1 [shape = 'u32[144,128]{1,0:T(1,128)}', space=vmem, size = 0x12000, scoped, tag = 'internal scratch']
  #allocation2 [shape = 'f32[4,16,1]{2,1,0:T(8,128)}', space=vmem, size = 0x8000, scoped, tag = 'scratch operand']
  #allocation3 [shape = 'f32[4,16,1]{2,1,0:T(8,128)}', space=vmem, size = 0x8000, scoped, tag = 'scratch operand']
  #allocation4 [shape = 'f32[4,16,32]{2,1,0:T(8,128)}', space=vmem, size = 0x8000, scoped, tag = 'scratch operand']
  %s0 = inlined_call_operand.hbm [shape: f32[8,16,32], index: 0, kind: input, shape index: {}]
  %s1 = inlined_call_operand.hbm [shape: f32[8,16,32], index: 1, kind: input, shape index: {}]
  %s2 = inlined_call_operand.hbm [shape: f32[8,16,32], index: 2, kind: input, shape index: {}]
  %s3 = inlined_call_operand.hbm [shape: f32[8,16,32], index: 3, kind: output, shape index: {}]
  %s4 = sld [smem:[#allocation0]]
  $region65: #{tpu_custom_call.1} parent=0
    _
  %s6 = ssub.s32 1, %s4
  %s7 = scalar_select 0, %s6, %s4
  $region1: #{tpu_custom_call.1} parent=0
    #allocation5 [shape = 'u8[65536]{0}', space=vmem, size = 0x10000, scoped, tag = 'input window, operand 0']
    #allocation6 [shape = 's32[2]{0}', space=sflag, size = 0x8, scoped, tag = 'scoped memory for tpu_custom_call.1']
    #allocation7 [shape = 's32[2]{0}', space=sflag, size = 0x8, scoped, tag = 'scoped memory for tpu_custom_call.1']
    #allocation8 [shape = 'u8[65536]{0}', space=vmem, size = 0x10000, scoped, tag = 'input window, operand 1']
    #allocation9 [shape = 's32[2]{0}', space=sflag, size = 0x8, scoped, tag = 'scoped memory for tpu_custom_call.1']
    #allocation10 [shape = 'u8[65536]{0}', space=vmem, size = 0x10000, scoped, tag = 'input window, operand 2']
    #allocation11 [shape = 'u8[65536]{0}', space=vmem, size = 0x10000, scoped, tag = 'output window, operand 0']
    %8 = vsyncpa [#allocation6], 0
    %s9 = scalar_lea.sflag [#allocation6], 1
    %10 = vsyncpa %s9, 0
    %11 = vsyncpa [#allocation9], 0
    %s12 = scalar_lea.sflag [#allocation9], 1
    %13 = vsyncpa %s12, 0
    %14 = vsyncpa [#allocation7], 0
    %s15 = scalar_lea.sflag [#allocation7], 1
    %16 = vsyncpa %s15, 0
    loop: start=0, step=1, limit=4
    $region2: #{tpu_custom_call.1} parent=1 // loop_pre_header
      _
    $region3: #{tpu_custom_call.1} parent=1 // loop_header
      %s18 = sphi 0, %s22
      %p19 = scmp.ge.s32.totalorder %s18, 4
      %s25 = sphi 0, %s44
      %s26 = sphi 0, %s40
      %s27 = sphi 0, %s36
      %s28 = sphi 0, %s25
      %s29 = sphi 0, %s26
      %s30 = sphi 0, %s27
      %s31 = sphi 0, %s28
      %s32 = sphi 0, %s29
      %s33 = sphi 0, %s30
      %s49 = sphi 0, %s51
      %s52 = sphi 0, %s49
      %s53 = sphi 0, %s52
      %s69 = sphi 0, %s53
      %s77 = sphi 0, %s79
      %s80 = sphi 0, %s77
      %s81 = sphi 0, %s80
      %s97 = sphi 0, %s81
      %s105 = sphi 0, %s107
      %s108 = sphi 0, %s105
      %s109 = sphi 0, %s108
      %s125 = sphi 0, %s109
      %s133 = sphi 0, %s135
      %s136 = sphi 0, %s133
      %s137 = sphi 0, %s136
      %s153 = sphi 0, %s137
    $region4: #{tpu_custom_call.1} parent=1 // loop_header_branch
      %21 = sbr.rel (%p19) target = $region8
    $region5: #{tpu_custom_call.1} parent=1 // loop_body
      %s23 = ssub.s32 %s18, 1
      %s24 = ssub.s32 %s18, 2
      %s34 = sadd.s32 1, %s27
      %p35 = scmp.ge.s32.totalorder %s34, 1
      %s36 = scalar_select %p35, 0, %s34
      %s37 = sadd.s32 1, %s26
      %s38 = scalar_select %p35, %s37, %s26
      %p39 = scmp.ge.s32.totalorder %s38, 1
      %s40 = scalar_select %p39, 0, %s38
      %s41 = sadd.s32 1, %s25
      %s42 = scalar_select %p39, %s41, %s25
      %p43 = scmp.ge.s32.totalorder %s42, 2
      %s44 = scalar_select %p43, 0, %s42
      %s45 = ssub.s32 %s25, %s44
      %s46 = ssub.s32 %s26, %s40
      %s47 = sor.u32 %s45, %s46
      %p48 = scmp.eq.s32.totalorder %s47, 0
      %s50 = sadd.s32 %s49, 1
      %s51 = scalar_select %p48, %s49, %s50
      %p54 = pneg %p48
      %p55 = scmp.eq.s32.totalorder %s18, 1
      %p56 = por %p54, %p55
      %p57 = scmp.ne.s32.totalorder %s49, %s52
      %p58 = scmp.eq.s32.totalorder %s18, 0
      %p59 = por %p57, %p58
      %p60 = scmp.ne.s32.totalorder %s49, %s52
      %p61 = scmp.eq.s32.totalorder %s23, 1
      %p62 = por %p60, %p61
      %p63 = scmp.ne.s32.totalorder %s52, %s53
      %p64 = scmp.eq.s32.totalorder %s23, 0
      %p65 = por %p63, %p64
      %p66 = scmp.ne.s32.totalorder %s52, %s53
      %p67 = scmp.eq.s32.totalorder %s24, 1
      %p68 = por %p66, %p67
      %p70 = scmp.ne.s32.totalorder %s53, %s69
      %p71 = scmp.eq.s32.totalorder %s24, 0
      %p72 = por %p70, %p71
      %s73 = ssub.s32 %s25, %s44
      %s74 = ssub.s32 %s27, %s36
      %s75 = sor.u32 %s73, %s74
      %p76 = scmp.eq.s32.totalorder %s75, 0
      %s78 = sadd.s32 %s77, 1
      %s79 = scalar_select %p76, %s77, %s78
      %p82 = pneg %p76
      %p83 = scmp.eq.s32.totalorder %s18, 1
      %p84 = por %p82, %p83
      %p85 = scmp.ne.s32.totalorder %s77, %s80
      %p86 = scmp.eq.s32.totalorder %s18, 0
      %p87 = por %p85, %p86
      %p88 = scmp.ne.s32.totalorder %s77, %s80
      %p89 = scmp.eq.s32.totalorder %s23, 1
      %p90 = por %p88, %p89
      %p91 = scmp.ne.s32.totalorder %s80, %s81
      %p92 = scmp.eq.s32.totalorder %s23, 0
      %p93 = por %p91, %p92
      %p94 = scmp.ne.s32.totalorder %s80, %s81
      %p95 = scmp.eq.s32.totalorder %s24, 1
      %p96 = por %p94, %p95
      %p98 = scmp.ne.s32.totalorder %s81, %s97
      %p99 = scmp.eq.s32.totalorder %s24, 0
      %p100 = por %p98, %p99
      %s101 = ssub.s32 %s25, %s44
      %s102 = ssub.s32 %s27, %s36
      %s103 = sor.u32 %s101, %s102
      %p104 = scmp.eq.s32.totalorder %s103, 0
      %s106 = sadd.s32 %s105, 1
      %s107 = scalar_select %p104, %s105, %s106
      %p110 = pneg %p104
      %p111 = scmp.eq.s32.totalorder %s18, 1
      %p112 = por %p110, %p111
      %p113 = scmp.ne.s32.totalorder %s105, %s108
      %p114 = scmp.eq.s32.totalorder %s18, 0
      %p115 = por %p113, %p114
      %p116 = scmp.ne.s32.totalorder %s105, %s108
      %p117 = scmp.eq.s32.totalorder %s23, 1
      %p118 = por %p116, %p117
      %p119 = scmp.ne.s32.totalorder %s108, %s109
      %p120 = scmp.eq.s32.totalorder %s23, 0
      %p121 = por %p119, %p120
      %p122 = scmp.ne.s32.totalorder %s108, %s109
      %p123 = scmp.eq.s32.totalorder %s24, 1
      %p124 = por %p122, %p123
      %p126 = scmp.ne.s32.totalorder %s109, %s125
      %p127 = scmp.eq.s32.totalorder %s24, 0
      %p128 = por %p126, %p127
      %s129 = ssub.s32 %s25, %s44
      %s130 = ssub.s32 %s26, %s40
      %s131 = sor.u32 %s129, %s130
      %p132 = scmp.eq.s32.totalorder %s131, 0
      %s134 = sadd.s32 %s133, 1
      %s135 = scalar_select %p132, %s133, %s134
      %p138 = pneg %p132
      %p139 = scmp.eq.s32.totalorder %s18, 1
      %p140 = por %p138, %p139
      %p141 = scmp.ne.s32.totalorder %s133, %s136
      %p142 = scmp.eq.s32.totalorder %s18, 0
      %p143 = por %p141, %p142
      %p144 = scmp.ne.s32.totalorder %s133, %s136
      %p145 = scmp.eq.s32.totalorder %s23, 1
      %p146 = por %p144, %p145
      %p147 = scmp.ne.s32.totalorder %s136, %s137
      %p148 = scmp.eq.s32.totalorder %s23, 0
      %p149 = por %p147, %p148
      %p150 = scmp.ne.s32.totalorder %s136, %s137
      %p151 = scmp.eq.s32.totalorder %s24, 1
      %p152 = por %p150, %p151
      %p154 = scmp.ne.s32.totalorder %s137, %s153
      %p155 = scmp.eq.s32.totalorder %s24, 0
      %p156 = por %p154, %p155
      %p157 = scmp.le.s32.totalorder 1, %s18
      %p158 = scmp.lt.s32.totalorder %s18, 3
      %p159 = pnand %p157, %p158
      %p160 = pneg %p159
      // Predicated region
      $region9: #{tpu_custom_call.1} parent=5 // pred_check
        _
      $region10: #{tpu_custom_call.1} parent=5 // pred_check_branch
        %162 = sbr.rel (%p159) target = $region12
      $region11: #{tpu_custom_call.1} parent=5 // pred_region
        %s163 = ssub.s32 %s18, 1
      $region12: #{tpu_custom_call.1} parent=5 // pred_fallthru
        _
      %p164 = scmp.lt.s32.totalorder %s18, 2
      // Predicated region
      $region13: #{tpu_custom_call.1} parent=5 // pred_check
        %p165 = pneg %p164
      $region14: #{tpu_custom_call.1} parent=5 // pred_check_branch
        %167 = sbr.rel (%p165) target = $region16
      $region15: #{tpu_custom_call.1} parent=5 // pred_region
        // Predicated region
        $region17: #{tpu_custom_call.1} parent=15 // pred_check
          %p168 = pneg %p59
        $region18: #{tpu_custom_call.1} parent=15 // pred_check_branch
          %170 = sbr.rel (%p168) target = $region20
        $region19: #{tpu_custom_call.1} parent=15 // pred_region
          %s171 = sand.u32 %s49, 1
          %s172 = scalar_lea.sflag [#allocation6], %s171
          %s173 = sand.u32 %s49, 1
          %s174 = smul.addr %s173, 64
          %s175 = scalar_lea.vmem [#allocation5], %s174
          %s176 = smul.u32 4, %s25
          %s177 = smul.u32 2, %s26
          %s179 = ssub.s32 1024, 1024
          %180 = vsyncadd %s172, %s179
          %s181 = smul.addr %s176, 2
          %s182 = sadd.s32 %s177, %s181
          %s183 = smul.addr %s182, 128
          %s184 = scalar_lea.hbm %s0, %s183
          %s185 = sshll.u32 %s175, 4
          %s186 = int_to_ptr.vmem [resolvable:$true] %s185
          %191 = dma.hbm_to_vmem [thread:$0]  %s184, 1024, %s186, %s172, 128, 128, 8
        $region20: #{tpu_custom_call.1} parent=15 // pred_fallthru
          _
        // Predicated region
        $region21: #{tpu_custom_call.1} parent=15 // pred_check
          %p192 = pneg %p87
        $region22: #{tpu_custom_call.1} parent=15 // pred_check_branch
          %194 = sbr.rel (%p192) target = $region24
        $region23: #{tpu_custom_call.1} parent=15 // pred_region
          %s195 = sand.u32 %s18, 1
          %s196 = scalar_lea.sflag [#allocation9], %s195
          %s197 = sand.u32 %s77, 1
          %s198 = smul.addr %s197, 64
          %s199 = scalar_lea.vmem [#allocation8], %s198
          %s200 = smul.u32 4, %s25
          %s201 = smul.u32 2, %s27
          %s203 = ssub.s32 1024, 1024
          %204 = vsyncadd %s196, %s203
          %s205 = smul.addr %s200, 2
          %s206 = sadd.s32 %s201, %s205
          %s207 = smul.addr %s206, 128
          %s208 = scalar_lea.hbm %s1, %s207
          %s209 = sshll.u32 %s199, 4
          %s210 = int_to_ptr.vmem [resolvable:$true] %s209
          %215 = dma.hbm_to_vmem [thread:$0]  %s208, 1024, %s210, %s196, 128, 128, 8
        $region24: #{tpu_custom_call.1} parent=15 // pred_fallthru
          _
        // Predicated region
        $region25: #{tpu_custom_call.1} parent=15 // pred_check
          %p216 = pneg %p115
        $region26: #{tpu_custom_call.1} parent=15 // pred_check_branch
          %218 = sbr.rel (%p216) target = $region28
        $region27: #{tpu_custom_call.1} parent=15 // pred_region
          %s219 = sand.u32 %s18, 1
          %s220 = scalar_lea.sflag [#allocation9], %s219
          %s221 = sand.u32 %s105, 1
          %s222 = smul.addr %s221, 64
          %s223 = scalar_lea.vmem [#allocation10], %s222
          %s224 = smul.u32 4, %s25
          %s225 = smul.u32 2, %s27
          %s227 = ssub.s32 1024, 1024
          %228 = vsyncadd %s220, %s227
          %s229 = smul.addr %s224, 2
          %s230 = sadd.s32 %s225, %s229
          %s231 = smul.addr %s230, 128
          %s232 = scalar_lea.hbm %s2, %s231
          %s233 = sshll.u32 %s223, 4
          %s234 = int_to_ptr.vmem [resolvable:$true] %s233
          %239 = dma.hbm_to_vmem [thread:$0]  %s232, 1024, %s234, %s220, 128, 128, 8
        $region28: #{tpu_custom_call.1} parent=15 // pred_fallthru
          _
      $region16: #{tpu_custom_call.1} parent=5 // pred_fallthru
        _
      %p240 = scmp.le.s32.totalorder 1, %s18
      %p241 = scmp.lt.s32.totalorder %s18, 3
      %p242 = pnand %p240, %p241
      %p243 = pneg %p242
      // Predicated region
      $region29: #{tpu_custom_call.1} parent=5 // pred_check
        _
      $region30: #{tpu_custom_call.1} parent=5 // pred_check_branch
        %245 = sbr.rel (%p242) target = $region32
      $region31: #{tpu_custom_call.1} parent=5 // pred_region
        %s246 = ssub.s32 %s18, 1
        %s247 = sand.u32 %s52, 1
        %s248 = scalar_lea.sflag [#allocation6], %s247
        %s249 = sand.u32 %s52, 1
        %s250 = smul.addr %s249, 64
        %s251 = scalar_lea.vmem [#allocation5], %s250
        // Predicated region
        $region33: #{tpu_custom_call.1} parent=31 // pred_check
          %p252 = pneg %p65
        $region34: #{tpu_custom_call.1} parent=31 // pred_check_branch
          %254 = sbr.rel (%p252) target = $region36
        $region35: #{tpu_custom_call.1} parent=31 // pred_region
          %255 = dma.done %s248, 1024
        $region36: #{tpu_custom_call.1} parent=31 // pred_fallthru
          _
        %s256 = sand.u32 %s23, 1
        %s257 = scalar_lea.sflag [#allocation9], %s256
        %s258 = sand.u32 %s80, 1
        %s259 = smul.addr %s258, 64
        %s260 = scalar_lea.vmem [#allocation8], %s259
        // Predicated region
        $region37: #{tpu_custom_call.1} parent=31 // pred_check
          %p261 = pneg %p93
        $region38: #{tpu_custom_call.1} parent=31 // pred_check_branch
          %263 = sbr.rel (%p261) target = $region40
        $region39: #{tpu_custom_call.1} parent=31 // pred_region
          %264 = dma.done %s257, 1024
        $region40: #{tpu_custom_call.1} parent=31 // pred_fallthru
          _
        %s265 = sand.u32 %s23, 1
        %s266 = scalar_lea.sflag [#allocation9], %s265
        %s267 = sand.u32 %s108, 1
        %s268 = smul.addr %s267, 64
        %s269 = scalar_lea.vmem [#allocation10], %s268
        // Predicated region
        $region41: #{tpu_custom_call.1} parent=31 // pred_check
          %p270 = pneg %p121
        $region42: #{tpu_custom_call.1} parent=31 // pred_check_branch
          %272 = sbr.rel (%p270) target = $region44
        $region43: #{tpu_custom_call.1} parent=31 // pred_region
          %273 = dma.done %s266, 1024
        $region44: #{tpu_custom_call.1} parent=31 // pred_fallthru
          _
        %s274 = sand.u32 %s52, 1
        %s275 = scalar_lea.sflag [#allocation6], %s274
        %s276 = sand.u32 %s52, 1
        %s277 = smul.addr %s276, 64
        %s278 = scalar_lea.vmem [#allocation5], %s277
        %p279 = pneg %p65
        %p280 = pneg %p62
        %s281 = sand.u32 %s23, 1
        %s282 = scalar_lea.sflag [#allocation9], %s281
        %s283 = sand.u32 %s80, 1
        %s284 = smul.addr %s283, 64
        %s285 = scalar_lea.vmem [#allocation8], %s284
        %p286 = pneg %p93
        %p287 = pneg %p90
        %s288 = sand.u32 %s23, 1
        %s289 = scalar_lea.sflag [#allocation9], %s288
        %s290 = sand.u32 %s108, 1
        %s291 = smul.addr %s290, 64
        %s292 = scalar_lea.vmem [#allocation10], %s291
        %p293 = pneg %p121
        %p294 = pneg %p118
        %p295 = pneg %p149
        %p296 = pneg %p146
        %s297 = sand.u32 %s136, 1
        %s298 = scalar_lea.sflag [#allocation7], %s297
        %s299 = sand.u32 %s136, 1
        %s300 = smul.addr %s299, 64
        %s301 = scalar_lea.vmem [#allocation11], %s300
        %s302 = smul.u32 4, %s28
        %s303 = smul.u32 2, %s29
        %s304 = smul.u32 4, %s28
        %s305 = smul.u32 2, %s30
        %s306 = smul.u32 4, %s28
        %s307 = smul.u32 2, %s30
        %s308 = smul.u32 4, %s28
        %s309 = smul.u32 2, %s29
        %p310 = scmp.eq.s32.totalorder %s30, 0
        // Predicated region
        $region45: #{tpu_custom_call.1} parent=31 // pred_check
          %p311 = pneg %p310
        $region46: #{tpu_custom_call.1} parent=31 // pred_check_branch
          %313 = sbr.rel (%p311) target = $region48
        $region47: #{tpu_custom_call.1} parent=31 // pred_region
          %vm314 = vcmask 7168
          %315 = vst.msk [vmem:[#allocation2] sm:$0xff] %vm314, -inf
          %316 = vst.msk [vmem:[#allocation2 + $0x8] sm:$0xff] %vm314, -inf
          %317 = vst.msk [vmem:[#allocation2 + $0x10] sm:$0xff] %vm314, -inf
          %318 = vst.msk [vmem:[#allocation2 + $0x18] sm:$0xff] %vm314, -inf
          %319 = vst.msk [vmem:[#allocation2 + $0x20] sm:$0xff] %vm314, -inf
          %320 = vst.msk [vmem:[#allocation2 + $0x28] sm:$0xff] %vm314, -inf
          %321 = vst.msk [vmem:[#allocation2 + $0x30] sm:$0xff] %vm314, -inf
          %322 = vst.msk [vmem:[#allocation2 + $0x38] sm:$0xff] %vm314, -inf
          %323 = vst.msk [vmem:[#allocation3] sm:$0xff] %vm314, 0.0
          %324 = vst.msk [vmem:[#allocation3 + $0x8] sm:$0xff] %vm314, 0.0
          %325 = vst.msk [vmem:[#allocation3 + $0x10] sm:$0xff] %vm314, 0.0
          %326 = vst.msk [vmem:[#allocation3 + $0x18] sm:$0xff] %vm314, 0.0
          %327 = vst.msk [vmem:[#allocation3 + $0x20] sm:$0xff] %vm314, 0.0
          %328 = vst.msk [vmem:[#allocation3 + $0x28] sm:$0xff] %vm314, 0.0
          %329 = vst.msk [vmem:[#allocation3 + $0x30] sm:$0xff] %vm314, 0.0
          %330 = vst.msk [vmem:[#allocation3 + $0x38] sm:$0xff] %vm314, 0.0
          %vm331 = vcmask 261120
          %332 = vst.msk [vmem:[#allocation4] sm:$0xff] %vm331, 0.0
          %333 = vst.msk [vmem:[#allocation4 + $0x8] sm:$0xff] %vm331, 0.0
          %334 = vst.msk [vmem:[#allocation4 + $0x10] sm:$0xff] %vm331, 0.0
          %335 = vst.msk [vmem:[#allocation4 + $0x18] sm:$0xff] %vm331, 0.0
          %336 = vst.msk [vmem:[#allocation4 + $0x20] sm:$0xff] %vm331, 0.0
          %337 = vst.msk [vmem:[#allocation4 + $0x28] sm:$0xff] %vm331, 0.0
          %338 = vst.msk [vmem:[#allocation4 + $0x30] sm:$0xff] %vm331, 0.0
          %339 = vst.msk [vmem:[#allocation4 + $0x38] sm:$0xff] %vm331, 0.0
        $region48: #{tpu_custom_call.1} parent=31 // pred_fallthru
          _
        %v340 = vld [vmem:[%s251] sm:$0xff]
        %v341 = vld [vmem:[%s251 + $0x8] sm:$0xff]
        %v342 = vld [vmem:[%s251 + $0x10] sm:$0xff]
        %v343 = vld [vmem:[%s251 + $0x18] sm:$0xff]
        %v344 = vld [vmem:[%s251 + $0x20] sm:$0xff]
        %v345 = vld [vmem:[%s251 + $0x28] sm:$0xff]
        %v346 = vld [vmem:[%s251 + $0x30] sm:$0xff]
        %v347 = vld [vmem:[%s251 + $0x38] sm:$0xff]
        %v348 = vmul.f32 %v340, 0.17677669
        %v349 = vmul.f32 %v341, 0.17677669
        %v350 = vmul.f32 %v342, 0.17677669
        %v351 = vmul.f32 %v343, 0.17677669
        %v352 = vmul.f32 %v344, 0.17677669
        %v353 = vmul.f32 %v345, 0.17677669
        %v354 = vmul.f32 %v346, 0.17677669
        %v355 = vmul.f32 %v347, 0.17677669
        %v356 = vld [vmem:[%s260] sm:$0xff]
        %v357 = vld [vmem:[%s260 + $0x8] sm:$0xff]
        %v358 = vld [vmem:[%s260 + $0x10] sm:$0xff]
        %v359 = vld [vmem:[%s260 + $0x18] sm:$0xff]
        %v360 = vld [vmem:[%s260 + $0x20] sm:$0xff]
        %v361 = vld [vmem:[%s260 + $0x28] sm:$0xff]
        %v362 = vld [vmem:[%s260 + $0x30] sm:$0xff]
        %v363 = vld [vmem:[%s260 + $0x38] sm:$0xff]
        %vm364 = vcmask 261120
        %v366 = vsel %vm364, %v348, 0
        %v369 = vsel %vm364, %v349, 0
        %v372 = vsel %vm364, %v356, 0
        %v375 = vsel %vm364, %v357, 0
        %377 = vmatprep.subr.mxu0 0.0
        %378 = vmatpush1.xpose.msra.mxu0 %v372
        %379 = vmatprep.subr.mxu0 0.0
        %380 = vmatpush1.xpose.msra.mxu0 %v375
        %381 = vmatprep.subr.mxu0 0.0
        %382 = vmatpush1.xpose.msra.mxu0 0.0
        %383 = vmatprep.subr.mxu0 0.0
        %384 = vmatpush1.xpose.msra.mxu0 0.0
        %385 = vmatprep.subr.mxu0 0.0
        %386 = vmatpush1.xpose.msra.mxu0 0.0
        %387 = vmatprep.subr.mxu0 0.0
        %388 = vmatpush1.xpose.msra.mxu0 0.0
        %389 = vmatprep.subr.mxu0 0.0
        %390 = vmatpush1.xpose.msra.mxu0 0.0
        %391 = vmatprep.subr.mxu0 0.0
        %392 = vmatpush1.xpose.msra.mxu0 0.0
        %393 = vmatprep.subr.mxu0 0.0
        %394 = vmatpush1.xpose.msra.mxu0 0.0
        %395 = vmatprep.subr.mxu0 0.0
        %396 = vmatpush1.xpose.msra.mxu0 0.0
        %397 = vmatprep.subr.mxu0 0.0
        %398 = vmatpush1.xpose.msra.mxu0 0.0
        %399 = vmatprep.subr.mxu0 0.0
        %400 = vmatpush1.xpose.msra.mxu0 0.0
        %401 = vmatprep.subr.mxu0 0.0
        %402 = vmatpush1.xpose.msra.mxu0 0.0
        %403 = vmatprep.subr.mxu0 0.0
        %404 = vmatpush1.xpose.msra.mxu0 0.0
        %405 = vmatprep.subr.mxu0 0.0
        %406 = vmatpush1.xpose.msra.mxu0 0.0
        %407 = vmatprep.subr.mxu0 0.0
        %408 = vmatpush1.xpose.msra.mxu0 0.0
        %409 = vmatprep.subr.mxu0 0.0
        %410 = vmatpush1.xpose.msra.mxu0 0.0
        %411 = vmatprep.subr.mxu0 0.0
        %412 = vmatpush1.xpose.msra.mxu0 0.0
        %413 = vmatprep.subr.mxu0 0.0
        %414 = vmatpush1.xpose.msra.mxu0 0.0
        %415 = vmatprep.subr.mxu0 0.0
        %416 = vmatpush1.xpose.msra.mxu0 0.0
        %417 = vmatprep.subr.mxu0 0.0
        %418 = vmatpush1.xpose.msra.mxu0 0.0
        %419 = vmatprep.subr.mxu0 0.0
        %420 = vmatpush1.xpose.msra.mxu0 0.0
        %421 = vmatprep.subr.mxu0 0.0
        %422 = vmatpush1.xpose.msra.mxu0 0.0
        %423 = vmatprep.subr.mxu0 0.0
        %424 = vmatpush1.xpose.msra.mxu0 0.0
        %425 = vmatprep.subr.mxu0 0.0
        %426 = vmatpush1.xpose.msra.mxu0 0.0
        %427 = vmatprep.subr.mxu0 0.0
        %428 = vmatpush1.xpose.msra.mxu0 0.0
        %429 = vmatprep.subr.mxu0 0.0
        %430 = vmatpush1.xpose.msra.mxu0 0.0
        %431 = vmatprep.subr.mxu0 0.0
        %432 = vmatpush1.xpose.msra.mxu0 0.0
        %433 = vmatprep.subr.mxu0 0.0
        %434 = vmatpush1.xpose.msra.mxu0 0.0
        %435 = vmatprep.subr.mxu0 0.0
        %436 = vmatpush1.xpose.msra.mxu0 0.0
        %437 = vmatprep.subr.mxu0 0.0
        %438 = vmatpush1.xpose.msra.mxu0 0.0
        %439 = vmatprep.subr.mxu0 0.0
        %440 = vmatpush1.xpose.msra.mxu0 0.0
        %441 = vmatprep.mubr.f32.mxu0 0.0
        %442 = vmatmul.mubr.f32.gmra.mrb[0].mxu0 %v366
        %v443 = vpop.f32.mrb[0].mxu0
        %v444 = vadd.f32 0.0, %v443
        %v445 = vpop.f32.mrb[0].mxu0
        %446 = vmatprep.mubr.f32.mxu0 0.0
        %447 = vmatmul.mubr.f32.gmra.mrb[0].mxu0 %v369
        %v448 = vpop.f32.mrb[0].mxu0
        %v449 = vadd.f32 0.0, %v448
        %v450 = vpop.f32.mrb[0].mxu0
        %451 = vdwg.mxu0
        %v453 = vsel %vm364, %v350, 0
        %v456 = vsel %vm364, %v351, 0
        %v459 = vsel %vm364, %v358, 0
        %v462 = vsel %vm364, %v359, 0
        %464 = vmatprep.subr.mxu0 0.0
        %465 = vmatpush1.xpose.msra.mxu0 %v459
        %466 = vmatprep.subr.mxu0 0.0
        %467 = vmatpush1.xpose.msra.mxu0 %v462
        %468 = vmatprep.subr.mxu0 0.0
        %469 = vmatpush1.xpose.msra.mxu0 0.0
        %470 = vmatprep.subr.mxu0 0.0
        %471 = vmatpush1.xpose.msra.mxu0 0.0
        %472 = vmatprep.subr.mxu0 0.0
        %473 = vmatpush1.xpose.msra.mxu0 0.0
        %474 = vmatprep.subr.mxu0 0.0
        %475 = vmatpush1.xpose.msra.mxu0 0.0
        %476 = vmatprep.subr.mxu0 0.0
        %477 = vmatpush1.xpose.msra.mxu0 0.0
        %478 = vmatprep.subr.mxu0 0.0
        %479 = vmatpush1.xpose.msra.mxu0 0.0
        %480 = vmatprep.subr.mxu0 0.0
        %481 = vmatpush1.xpose.msra.mxu0 0.0
        %482 = vmatprep.subr.mxu0 0.0
        %483 = vmatpush1.xpose.msra.mxu0 0.0
        %484 = vmatprep.subr.mxu0 0.0
        %485 = vmatpush1.xpose.msra.mxu0 0.0
        %486 = vmatprep.subr.mxu0 0.0
        %487 = vmatpush1.xpose.msra.mxu0 0.0
        %488 = vmatprep.subr.mxu0 0.0
        %489 = vmatpush1.xpose.msra.mxu0 0.0
        %490 = vmatprep.subr.mxu0 0.0
        %491 = vmatpush1.xpose.msra.mxu0 0.0
        %492 = vmatprep.subr.mxu0 0.0
        %493 = vmatpush1.xpose.msra.mxu0 0.0
        %494 = vmatprep.subr.mxu0 0.0
        %495 = vmatpush1.xpose.msra.mxu0 0.0
        %496 = vmatprep.subr.mxu0 0.0
        %497 = vmatpush1.xpose.msra.mxu0 0.0
        %498 = vmatprep.subr.mxu0 0.0
        %499 = vmatpush1.xpose.msra.mxu0 0.0
        %500 = vmatprep.subr.mxu0 0.0
        %501 = vmatpush1.xpose.msra.mxu0 0.0
        %502 = vmatprep.subr.mxu0 0.0
        %503 = vmatpush1.xpose.msra.mxu0 0.0
        %504 = vmatprep.subr.mxu0 0.0
        %505 = vmatpush1.xpose.msra.mxu0 0.0
        %506 = vmatprep.subr.mxu0 0.0
        %507 = vmatpush1.xpose.msra.mxu0 0.0
        %508 = vmatprep.subr.mxu0 0.0
        %509 = vmatpush1.xpose.msra.mxu0 0.0
        %510 = vmatprep.subr.mxu0 0.0
        %511 = vmatpush1.xpose.msra.mxu0 0.0
        %512 = vmatprep.subr.mxu0 0.0
        %513 = vmatpush1.xpose.msra.mxu0 0.0
        %514 = vmatprep.subr.mxu0 0.0
        %515 = vmatpush1.xpose.msra.mxu0 0.0
        %516 = vmatprep.subr.mxu0 0.0
        %517 = vmatpush1.xpose.msra.mxu0 0.0
        %518 = vmatprep.subr.mxu0 0.0
        %519 = vmatpush1.xpose.msra.mxu0 0.0
        %520 = vmatprep.subr.mxu0 0.0
        %521 = vmatpush1.xpose.msra.mxu0 0.0
        %522 = vmatprep.subr.mxu0 0.0
        %523 = vmatpush1.xpose.msra.mxu0 0.0
        %524 = vmatprep.subr.mxu0 0.0
        %525 = vmatpush1.xpose.msra.mxu0 0.0
        %526 = vmatprep.subr.mxu0 0.0
        %527 = vmatpush1.xpose.msra.mxu0 0.0
        %528 = vmatprep.mubr.f32.mxu0 0.0
        %529 = vmatmul.mubr.f32.gmra.mrb[0].mxu0 %v453
        %v530 = vpop.f32.mrb[0].mxu0
        %v531 = vadd.f32 0.0, %v530
        %v532 = vpop.f32.mrb[0].mxu0
        %533 = vmatprep.mubr.f32.mxu0 0.0
        %534 = vmatmul.mubr.f32.gmra.mrb[0].mxu0 %v456
        %v535 = vpop.f32.mrb[0].mxu0
        %v536 = vadd.f32 0.0, %v535
        %v537 = vpop.f32.mrb[0].mxu0
        %538 = vdwg.mxu0
        %v540 = vsel %vm364, %v352, 0
        %v543 = vsel %vm364, %v353, 0
        %v546 = vsel %vm364, %v360, 0
        %v549 = vsel %vm364, %v361, 0
        %551 = vmatprep.subr.mxu0 0.0
        %552 = vmatpush1.xpose.msra.mxu0 %v546
        %553 = vmatprep.subr.mxu0 0.0
        %554 = vmatpush1.xpose.msra.mxu0 %v549
        %555 = vmatprep.subr.mxu0 0.0
        %556 = vmatpush1.xpose.msra.mxu0 0.0
        %557 = vmatprep.subr.mxu0 0.0
        %558 = vmatpush1.xpose.msra.mxu0 0.0
        %559 = vmatprep.subr.mxu0 0.0
        %560 = vmatpush1.xpose.msra.mxu0 0.0
        %561 = vmatprep.subr.mxu0 0.0
        %562 = vmatpush1.xpose.msra.mxu0 0.0
        %563 = vmatprep.subr.mxu0 0.0
        %564 = vmatpush1.xpose.msra.mxu0 0.0
        %565 = vmatprep.subr.mxu0 0.0
        %566 = vmatpush1.xpose.msra.mxu0 0.0
        %567 = vmatprep.subr.mxu0 0.0
        %568 = vmatpush1.xpose.msra.mxu0 0.0
        %569 = vmatprep.subr.mxu0 0.0
        %570 = vmatpush1.xpose.msra.mxu0 0.0
        %571 = vmatprep.subr.mxu0 0.0
        %572 = vmatpush1.xpose.msra.mxu0 0.0
        %573 = vmatprep.subr.mxu0 0.0
        %574 = vmatpush1.xpose.msra.mxu0 0.0
        %575 = vmatprep.subr.mxu0 0.0
        %576 = vmatpush1.xpose.msra.mxu0 0.0
        %577 = vmatprep.subr.mxu0 0.0
        %578 = vmatpush1.xpose.msra.mxu0 0.0
        %579 = vmatprep.subr.mxu0 0.0
        %580 = vmatpush1.xpose.msra.mxu0 0.0
        %581 = vmatprep.subr.mxu0 0.0
        %582 = vmatpush1.xpose.msra.mxu0 0.0
        %583 = vmatprep.subr.mxu0 0.0
        %584 = vmatpush1.xpose.msra.mxu0 0.0
        %585 = vmatprep.subr.mxu0 0.0
        %586 = vmatpush1.xpose.msra.mxu0 0.0
        %587 = vmatprep.subr.mxu0 0.0
        %588 = vmatpush1.xpose.msra.mxu0 0.0
        %589 = vmatprep.subr.mxu0 0.0
        %590 = vmatpush1.xpose.msra.mxu0 0.0
        %591 = vmatprep.subr.mxu0 0.0
        %592 = vmatpush1.xpose.msra.mxu0 0.0
        %593 = vmatprep.subr.mxu0 0.0
        %594 = vmatpush1.xpose.msra.mxu0 0.0
        %595 = vmatprep.subr.mxu0 0.0
        %596 = vmatpush1.xpose.msra.mxu0 0.0
        %597 = vmatprep.subr.mxu0 0.0
        %598 = vmatpush1.xpose.msra.mxu0 0.0
        %599 = vmatprep.subr.mxu0 0.0
        %600 = vmatpush1.xpose.msra.mxu0 0.0
        %601 = vmatprep.subr.mxu0 0.0
        %602 = vmatpush1.xpose.msra.mxu0 0.0
        %603 = vmatprep.subr.mxu0 0.0
        %604 = vmatpush1.xpose.msra.mxu0 0.0
        %605 = vmatprep.subr.mxu0 0.0
        %606 = vmatpush1.xpose.msra.mxu0 0.0
        %607 = vmatprep.subr.mxu0 0.0
        %608 = vmatpush1.xpose.msra.mxu0 0.0
        %609 = vmatprep.subr.mxu0 0.0
        %610 = vmatpush1.xpose.msra.mxu0 0.0
        %611 = vmatprep.subr.mxu0 0.0
        %612 = vmatpush1.xpose.msra.mxu0 0.0
        %613 = vmatprep.subr.mxu0 0.0
        %614 = vmatpush1.xpose.msra.mxu0 0.0
        %615 = vmatprep.mubr.f32.mxu0 0.0
        %616 = vmatmul.mubr.f32.gmra.mrb[0].mxu0 %v540
        %v617 = vpop.f32.mrb[0].mxu0
        %v618 = vadd.f32 0.0, %v617
        %v619 = vpop.f32.mrb[0].mxu0
        %620 = vmatprep.mubr.f32.mxu0 0.0
        %621 = vmatmul.mubr.f32.gmra.mrb[0].mxu0 %v543
        %v622 = vpop.f32.mrb[0].mxu0
        %v623 = vadd.f32 0.0, %v622
        %v624 = vpop.f32.mrb[0].mxu0
        %625 = vdwg.mxu0
        %v627 = vsel %vm364, %v354, 0
        %v630 = vsel %vm364, %v355, 0
        %v633 = vsel %vm364, %v362, 0
        %v636 = vsel %vm364, %v363, 0
        %638 = vmatprep.subr.mxu0 0.0
        %639 = vmatpush1.xpose.msra.mxu0 %v633
        %640 = vmatprep.subr.mxu0 0.0
        %641 = vmatpush1.xpose.msra.mxu0 %v636
        %642 = vmatprep.subr.mxu0 0.0
        %643 = vmatpush1.xpose.msra.mxu0 0.0
        %644 = vmatprep.subr.mxu0 0.0
        %645 = vmatpush1.xpose.msra.mxu0 0.0
        %646 = vmatprep.subr.mxu0 0.0
        %647 = vmatpush1.xpose.msra.mxu0 0.0
        %648 = vmatprep.subr.mxu0 0.0
        %649 = vmatpush1.xpose.msra.mxu0 0.0
        %650 = vmatprep.subr.mxu0 0.0
        %651 = vmatpush1.xpose.msra.mxu0 0.0
        %652 = vmatprep.subr.mxu0 0.0
        %653 = vmatpush1.xpose.msra.mxu0 0.0
        %654 = vmatprep.subr.mxu0 0.0
        %655 = vmatpush1.xpose.msra.mxu0 0.0
        %656 = vmatprep.subr.mxu0 0.0
        %657 = vmatpush1.xpose.msra.mxu0 0.0
        %658 = vmatprep.subr.mxu0 0.0
        %659 = vmatpush1.xpose.msra.mxu0 0.0
        %660 = vmatprep.subr.mxu0 0.0
        %661 = vmatpush1.xpose.msra.mxu0 0.0
        %662 = vmatprep.subr.mxu0 0.0
        %663 = vmatpush1.xpose.msra.mxu0 0.0
        %664 = vmatprep.subr.mxu0 0.0
        %665 = vmatpush1.xpose.msra.mxu0 0.0
        %666 = vmatprep.subr.mxu0 0.0
        %667 = vmatpush1.xpose.msra.mxu0 0.0
        %668 = vmatprep.subr.mxu0 0.0
        %669 = vmatpush1.xpose.msra.mxu0 0.0
        %670 = vmatprep.subr.mxu0 0.0
        %671 = vmatpush1.xpose.msra.mxu0 0.0
        %672 = vmatprep.subr.mxu0 0.0
        %673 = vmatpush1.xpose.msra.mxu0 0.0
        %674 = vmatprep.subr.mxu0 0.0
        %675 = vmatpush1.xpose.msra.mxu0 0.0
        %676 = vmatprep.subr.mxu0 0.0
        %677 = vmatpush1.xpose.msra.mxu0 0.0
        %678 = vmatprep.subr.mxu0 0.0
        %679 = vmatpush1.xpose.msra.mxu0 0.0
        %680 = vmatprep.subr.mxu0 0.0
        %681 = vmatpush1.xpose.msra.mxu0 0.0
        %682 = vmatprep.subr.mxu0 0.0
        %683 = vmatpush1.xpose.msra.mxu0 0.0
        %684 = vmatprep.subr.mxu0 0.0
        %685 = vmatpush1.xpose.msra.mxu0 0.0
        %686 = vmatprep.subr.mxu0 0.0
        %687 = vmatpush1.xpose.msra.mxu0 0.0
        %688 = vmatprep.subr.mxu0 0.0
        %689 = vmatpush1.xpose.msra.mxu0 0.0
        %690 = vmatprep.subr.mxu0 0.0
        %691 = vmatpush1.xpose.msra.mxu0 0.0
        %692 = vmatprep.subr.mxu0 0.0
        %693 = vmatpush1.xpose.msra.mxu0 0.0
        %694 = vmatprep.subr.mxu0 0.0
        %695 = vmatpush1.xpose.msra.mxu0 0.0
        %696 = vmatprep.subr.mxu0 0.0
        %697 = vmatpush1.xpose.msra.mxu0 0.0
        %698 = vmatprep.subr.mxu0 0.0
        %699 = vmatpush1.xpose.msra.mxu0 0.0
        %700 = vmatprep.subr.mxu0 0.0
        %701 = vmatpush1.xpose.msra.mxu0 0.0
        %702 = vmatprep.mubr.f32.mxu0 0.0
        %703 = vmatmul.mubr.f32.gmra.mrb[0].mxu0 %v627
        %v704 = vpop.f32.mrb[0].mxu0
        %v705 = vadd.f32 0.0, %v704
        %v706 = vpop.f32.mrb[0].mxu0
        %707 = vmatprep.mubr.f32.mxu0 0.0
        %708 = vmatmul.mubr.f32.gmra.mrb[0].mxu0 %v630
        %v709 = vpop.f32.mrb[0].mxu0
        %v710 = vadd.f32 0.0, %v709
        %v711 = vpop.f32.mrb[0].mxu0
        %712 = vdwg.mxu0
        %v713 = vld [vmem:[#allocation2] sm:$0xff]
        %v714 = vld [vmem:[#allocation2 + $0x8] sm:$0xff]
        %v715 = vld [vmem:[#allocation2 + $0x10] sm:$0xff]
        %v716 = vld [vmem:[#allocation2 + $0x18] sm:$0xff]
        %v717 = vld [vmem:[#allocation2 + $0x20] sm:$0xff]
        %v718 = vld [vmem:[#allocation2 + $0x28] sm:$0xff]
        %v719 = vld [vmem:[#allocation2 + $0x30] sm:$0xff]
        %v720 = vld [vmem:[#allocation2 + $0x38] sm:$0xff]
        %vm721 = vcmask 130048
        %v722 = vsel %vm721, %v444, -inf
        %723 = vmax.xlane.f32.xlu0 %v722
        %v724 = vpop.xlane.xlu0 %723
        %v725 = vsel %vm721, %v449, -inf
        %726 = vmax.xlane.f32.xlu0 %v725
        %v727 = vpop.xlane.xlu0 %726
        %v728 = vsel %vm721, %v531, -inf
        %729 = vmax.xlane.f32.xlu0 %v728
        %v730 = vpop.xlane.xlu0 %729
        %v731 = vsel %vm721, %v536, -inf
        %732 = vmax.xlane.f32.xlu0 %v731
        %v733 = vpop.xlane.xlu0 %732
        %v734 = vsel %vm721, %v618, -inf
        %735 = vmax.xlane.f32.xlu0 %v734
        %v736 = vpop.xlane.xlu0 %735
        %v737 = vsel %vm721, %v623, -inf
        %738 = vmax.xlane.f32.xlu0 %v737
        %v739 = vpop.xlane.xlu0 %738
        %v740 = vsel %vm721, %v705, -inf
        %741 = vmax.xlane.f32.xlu0 %v740
        %v742 = vpop.xlane.xlu0 %741
        %v743 = vsel %vm721, %v710, -inf
        %744 = vmax.xlane.f32.xlu0 %v743
        %v745 = vpop.xlane.xlu0 %744
        %v746 = vmax.f32 %v713, %v724
        %v747 = vmax.f32 %v714, %v727
        %v748 = vmax.f32 %v715, %v730
        %v749 = vmax.f32 %v716, %v733
        %v750 = vmax.f32 %v717, %v736
        %v751 = vmax.f32 %v718, %v739
        %v752 = vmax.f32 %v719, %v742
        %v753 = vmax.f32 %v720, %v745
        %v754 = vsub.f32 %v713, %v746
        %v755 = vsub.f32 %v714, %v747
        %v756 = vsub.f32 %v715, %v748
        %v757 = vsub.f32 %v716, %v749
        %v758 = vsub.f32 %v717, %v750
        %v759 = vsub.f32 %v718, %v751
        %v760 = vsub.f32 %v719, %v752
        %v761 = vsub.f32 %v720, %v753
        %v762 = vmul.f32 %v754, 1.442695
        %v763 = vpow.pop %v762
        %v764 = vmul.f32 %v755, 1.442695
        %v765 = vpow.pop %v764
        %v766 = vmul.f32 %v756, 1.442695
        %v767 = vpow.pop %v766
        %v768 = vmul.f32 %v757, 1.442695
        %v769 = vpow.pop %v768
        %v770 = vmul.f32 %v758, 1.442695
        %v771 = vpow.pop %v770
        %v772 = vmul.f32 %v759, 1.442695
        %v773 = vpow.pop %v772
        %v774 = vmul.f32 %v760, 1.442695
        %v775 = vpow.pop %v774
        %v776 = vmul.f32 %v761, 1.442695
        %v777 = vpow.pop %v776
        %779 = vset.pattern.permute.xlu0 0
        %780 = vperm.xlu0 %779, %v746
        %v781 = vpop.permute.xlu0 %780
        %784 = vset.pattern.permute.xlu0 0
        %785 = vperm.xlu0 %784, %v747
        %v786 = vpop.permute.xlu0 %785
        %789 = vset.pattern.permute.xlu0 0
        %790 = vperm.xlu0 %789, %v748
        %v791 = vpop.permute.xlu0 %790
        %794 = vset.pattern.permute.xlu0 0
        %795 = vperm.xlu0 %794, %v749
        %v796 = vpop.permute.xlu0 %795
        %799 = vset.pattern.permute.xlu0 0
        %800 = vperm.xlu0 %799, %v750
        %v801 = vpop.permute.xlu0 %800
        %804 = vset.pattern.permute.xlu0 0
        %805 = vperm.xlu0 %804, %v751
        %v806 = vpop.permute.xlu0 %805
        %809 = vset.pattern.permute.xlu0 0
        %810 = vperm.xlu0 %809, %v752
        %v811 = vpop.permute.xlu0 %810
        %814 = vset.pattern.permute.xlu0 0
        %815 = vperm.xlu0 %814, %v753
        %v816 = vpop.permute.xlu0 %815
        %v818 = vsub.f32 %v444, %v781
        %v819 = vsub.f32 %v449, %v786
        %v820 = vsub.f32 %v531, %v791
        %v821 = vsub.f32 %v536, %v796
        %v822 = vsub.f32 %v618, %v801
        %v823 = vsub.f32 %v623, %v806
        %v824 = vsub.f32 %v705, %v811
        %v825 = vsub.f32 %v710, %v816
        %v826 = vmul.f32 %v818, 1.442695
        %v827 = vpow.pop %v826
        %v828 = vmul.f32 %v819, 1.442695
        %v829 = vpow.pop %v828
        %v830 = vmul.f32 %v820, 1.442695
        %v831 = vpow.pop %v830
        %v832 = vmul.f32 %v821, 1.442695
        %v833 = vpow.pop %v832
        %v834 = vmul.f32 %v822, 1.442695
        %v835 = vpow.pop %v834
        %v836 = vmul.f32 %v823, 1.442695
        %v837 = vpow.pop %v836
        %v838 = vmul.f32 %v824, 1.442695
        %v839 = vpow.pop %v838
        %v840 = vmul.f32 %v825, 1.442695
        %v841 = vpow.pop %v840
        %v842 = vld [vmem:[#allocation3] sm:$0xff]
        %v843 = vld [vmem:[#allocation3 + $0x8] sm:$0xff]
        %v844 = vld [vmem:[#allocation3 + $0x10] sm:$0xff]
        %v845 = vld [vmem:[#allocation3 + $0x18] sm:$0xff]
        %v846 = vld [vmem:[#allocation3 + $0x20] sm:$0xff]
        %v847 = vld [vmem:[#allocation3 + $0x28] sm:$0xff]
        %v848 = vld [vmem:[#allocation3 + $0x30] sm:$0xff]
        %v849 = vld [vmem:[#allocation3 + $0x38] sm:$0xff]
        %v850 = vmul.f32 %v763, %v842
        %v851 = vmul.f32 %v765, %v843
        %v852 = vmul.f32 %v767, %v844
        %v853 = vmul.f32 %v769, %v845
        %v854 = vmul.f32 %v771, %v846
        %v855 = vmul.f32 %v773, %v847
        %v856 = vmul.f32 %v775, %v848
        %v857 = vmul.f32 %v777, %v849
        %v858 = vsel %vm721, %v827, 0.0
        %859 = vadd.xlane.f32.xlu0 %v858
        %v860 = vpop.xlane.xlu0 %859
        %v861 = vsel %vm721, %v829, 0.0
        %862 = vadd.xlane.f32.xlu0 %v861
        %v863 = vpop.xlane.xlu0 %862
        %v864 = vsel %vm721, %v831, 0.0
        %865 = vadd.xlane.f32.xlu0 %v864
        %v866 = vpop.xlane.xlu0 %865
        %v867 = vsel %vm721, %v833, 0.0
        %868 = vadd.xlane.f32.xlu0 %v867
        %v869 = vpop.xlane.xlu0 %868
        %v870 = vsel %vm721, %v835, 0.0
        %871 = vadd.xlane.f32.xlu0 %v870
        %v872 = vpop.xlane.xlu0 %871
        %v873 = vsel %vm721, %v837, 0.0
        %874 = vadd.xlane.f32.xlu0 %v873
        %v875 = vpop.xlane.xlu0 %874
        %v876 = vsel %vm721, %v839, 0.0
        %877 = vadd.xlane.f32.xlu0 %v876
        %v878 = vpop.xlane.xlu0 %877
        %v879 = vsel %vm721, %v841, 0.0
        %880 = vadd.xlane.f32.xlu0 %v879
        %v881 = vpop.xlane.xlu0 %880
        %v882 = vadd.f32 %v850, %v860
        %v883 = vadd.f32 %v851, %v863
        %v884 = vadd.f32 %v852, %v866
        %v885 = vadd.f32 %v853, %v869
        %v886 = vadd.f32 %v854, %v872
        %v887 = vadd.f32 %v855, %v875
        %v888 = vadd.f32 %v856, %v878
        %v889 = vadd.f32 %v857, %v881
        %vm890 = vcmask 7168
        %891 = vst.msk [vmem:[#allocation3] sm:$0xff] %vm890, %v882
        %892 = vst.msk [vmem:[#allocation3 + $0x8] sm:$0xff] %vm890, %v883
        %893 = vst.msk [vmem:[#allocation3 + $0x10] sm:$0xff] %vm890, %v884
        %894 = vst.msk [vmem:[#allocation3 + $0x18] sm:$0xff] %vm890, %v885
        %895 = vst.msk [vmem:[#allocation3 + $0x20] sm:$0xff] %vm890, %v886
        %896 = vst.msk [vmem:[#allocation3 + $0x28] sm:$0xff] %vm890, %v887
        %897 = vst.msk [vmem:[#allocation3 + $0x30] sm:$0xff] %vm890, %v888
        %898 = vst.msk [vmem:[#allocation3 + $0x38] sm:$0xff] %vm890, %v889
        %v899 = vld [vmem:[#allocation4] sm:$0xff]
        %v900 = vld [vmem:[#allocation4 + $0x8] sm:$0xff]
        %v901 = vld [vmem:[#allocation4 + $0x10] sm:$0xff]
        %v902 = vld [vmem:[#allocation4 + $0x18] sm:$0xff]
        %v903 = vld [vmem:[#allocation4 + $0x20] sm:$0xff]
        %v904 = vld [vmem:[#allocation4 + $0x28] sm:$0xff]
        %v905 = vld [vmem:[#allocation4 + $0x30] sm:$0xff]
        %v906 = vld [vmem:[#allocation4 + $0x38] sm:$0xff]
        %908 = vset.pattern.permute.xlu0 0
        %909 = vperm.xlu0 %908, %v763
        %v910 = vpop.permute.xlu0 %909
        %913 = vset.pattern.permute.xlu0 0
        %914 = vperm.xlu0 %913, %v765
        %v915 = vpop.permute.xlu0 %914
        %918 = vset.pattern.permute.xlu0 0
        %919 = vperm.xlu0 %918, %v767
        %v920 = vpop.permute.xlu0 %919
        %923 = vset.pattern.permute.xlu0 0
        %924 = vperm.xlu0 %923, %v769
        %v925 = vpop.permute.xlu0 %924
        %928 = vset.pattern.permute.xlu0 0
        %929 = vperm.xlu0 %928, %v771
        %v930 = vpop.permute.xlu0 %929
        %933 = vset.pattern.permute.xlu0 0
        %934 = vperm.xlu0 %933, %v773
        %v935 = vpop.permute.xlu0 %934
        %938 = vset.pattern.permute.xlu0 0
        %939 = vperm.xlu0 %938, %v775
        %v940 = vpop.permute.xlu0 %939
        %943 = vset.pattern.permute.xlu0 0
        %944 = vperm.xlu0 %943, %v777
        %v945 = vpop.permute.xlu0 %944
        %v947 = vmul.f32 %v910, %v899
        %v948 = vmul.f32 %v915, %v900
        %v949 = vmul.f32 %v920, %v901
        %v950 = vmul.f32 %v925, %v902
        %v951 = vmul.f32 %v930, %v903
        %v952 = vmul.f32 %v935, %v904
        %v953 = vmul.f32 %v940, %v905
        %v954 = vmul.f32 %v945, %v906
        %v955 = vld [vmem:[%s269] sm:$0xff]
        %v956 = vld [vmem:[%s269 + $0x8] sm:$0xff]
        %v957 = vld [vmem:[%s269 + $0x10] sm:$0xff]
        %v958 = vld [vmem:[%s269 + $0x18] sm:$0xff]
        %v959 = vld [vmem:[%s269 + $0x20] sm:$0xff]
        %v960 = vld [vmem:[%s269 + $0x28] sm:$0xff]
        %v961 = vld [vmem:[%s269 + $0x30] sm:$0xff]
        %v962 = vld [vmem:[%s269 + $0x38] sm:$0xff]
        %v964 = vsel %vm721, %v827, 0
        %v967 = vsel %vm721, %v829, 0
        %969 = vmatprep.subr.mxu0 0.0
        %970 = vmatpush1.msra.mxu0 %v955
        %971 = vmatprep.subr.mxu0 0.0
        %972 = vmatpush1.msra.mxu0 %v956
        %973 = vmatprep.subr.mxu0 0.0
        %974 = vmatpush1.msra.mxu0 0.0
        %975 = vmatprep.subr.mxu0 0.0
        %976 = vmatpush1.msra.mxu0 0.0
        %977 = vmatprep.subr.mxu0 0.0
        %978 = vmatpush1.msra.mxu0 0.0
        %979 = vmatprep.subr.mxu0 0.0
        %980 = vmatpush1.msra.mxu0 0.0
        %981 = vmatprep.subr.mxu0 0.0
        %982 = vmatpush1.msra.mxu0 0.0
        %983 = vmatprep.subr.mxu0 0.0
        %984 = vmatpush1.msra.mxu0 0.0
        %985 = vmatprep.subr.mxu0 0.0
        %986 = vmatpush1.msra.mxu0 0.0
        %987 = vmatprep.subr.mxu0 0.0
        %988 = vmatpush1.msra.mxu0 0.0
        %989 = vmatprep.subr.mxu0 0.0
        %990 = vmatpush1.msra.mxu0 0.0
        %991 = vmatprep.subr.mxu0 0.0
        %992 = vmatpush1.msra.mxu0 0.0
        %993 = vmatprep.subr.mxu0 0.0
        %994 = vmatpush1.msra.mxu0 0.0
        %995 = vmatprep.subr.mxu0 0.0
        %996 = vmatpush1.msra.mxu0 0.0
        %997 = vmatprep.subr.mxu0 0.0
        %998 = vmatpush1.msra.mxu0 0.0
        %999 = vmatprep.subr.mxu0 0.0
        %1000 = vmatpush1.msra.mxu0 0.0
        %1001 = vmatprep.subr.mxu0 0.0
        %1002 = vmatpush1.msra.mxu0 0.0
        %1003 = vmatprep.subr.mxu0 0.0
        %1004 = vmatpush1.msra.mxu0 0.0
        %1005 = vmatprep.subr.mxu0 0.0
        %1006 = vmatpush1.msra.mxu0 0.0
        %1007 = vmatprep.subr.mxu0 0.0
        %1008 = vmatpush1.msra.mxu0 0.0
        %1009 = vmatprep.subr.mxu0 0.0
        %1010 = vmatpush1.msra.mxu0 0.0
        %1011 = vmatprep.subr.mxu0 0.0
        %1012 = vmatpush1.msra.mxu0 0.0
        %1013 = vmatprep.subr.mxu0 0.0
        %1014 = vmatpush1.msra.mxu0 0.0
        %1015 = vmatprep.subr.mxu0 0.0
        %1016 = vmatpush1.msra.mxu0 0.0
        %1017 = vmatprep.subr.mxu0 0.0
        %1018 = vmatpush1.msra.mxu0 0.0
        %1019 = vmatprep.subr.mxu0 0.0
        %1020 = vmatpush1.msra.mxu0 0.0
        %1021 = vmatprep.subr.mxu0 0.0
        %1022 = vmatpush1.msra.mxu0 0.0
        %1023 = vmatprep.subr.mxu0 0.0
        %1024 = vmatpush1.msra.mxu0 0.0
        %1025 = vmatprep.subr.mxu0 0.0
        %1026 = vmatpush1.msra.mxu0 0.0
        %1027 = vmatprep.subr.mxu0 0.0
        %1028 = vmatpush1.msra.mxu0 0.0
        %1029 = vmatprep.subr.mxu0 0.0
        %1030 = vmatpush1.msra.mxu0 0.0
        %1031 = vmatprep.subr.mxu0 0.0
        %1032 = vmatpush1.msra.mxu0 0.0
        %1033 = vmatprep.mubr.f32.mxu0 0.0
        %1034 = vmatmul.mubr.f32.gmra.mrb[0].mxu0 %v964
        %v1035 = vpop.f32.mrb[0].mxu0
        %v1036 = vadd.f32 0.0, %v1035
        %v1037 = vpop.f32.mrb[0].mxu0
        %1038 = vmatprep.mubr.f32.mxu0 0.0
        %1039 = vmatmul.mubr.f32.gmra.mrb[0].mxu0 %v967
        %v1040 = vpop.f32.mrb[0].mxu0
        %v1041 = vadd.f32 0.0, %v1040
        %v1042 = vpop.f32.mrb[0].mxu0
        %1043 = vdwg.mxu0
        %v1045 = vsel %vm721, %v831, 0
        %v1048 = vsel %vm721, %v833, 0
        %1050 = vmatprep.subr.mxu0 0.0
        %1051 = vmatpush1.msra.mxu0 %v957
        %1052 = vmatprep.subr.mxu0 0.0
        %1053 = vmatpush1.msra.mxu0 %v958
        %1054 = vmatprep.subr.mxu0 0.0
        %1055 = vmatpush1.msra.mxu0 0.0
        %1056 = vmatprep.subr.mxu0 0.0
        %1057 = vmatpush1.msra.mxu0 0.0
        %1058 = vmatprep.subr.mxu0 0.0
        %1059 = vmatpush1.msra.mxu0 0.0
        %1060 = vmatprep.subr.mxu0 0.0
        %1061 = vmatpush1.msra.mxu0 0.0
        %1062 = vmatprep.subr.mxu0 0.0
        %1063 = vmatpush1.msra.mxu0 0.0
        %1064 = vmatprep.subr.mxu0 0.0
        %1065 = vmatpush1.msra.mxu0 0.0
        %1066 = vmatprep.subr.mxu0 0.0
        %1067 = vmatpush1.msra.mxu0 0.0
        %1068 = vmatprep.subr.mxu0 0.0
        %1069 = vmatpush1.msra.mxu0 0.0
        %1070 = vmatprep.subr.mxu0 0.0
        %1071 = vmatpush1.msra.mxu0 0.0
        %1072 = vmatprep.subr.mxu0 0.0
        %1073 = vmatpush1.msra.mxu0 0.0
        %1074 = vmatprep.subr.mxu0 0.0
        %1075 = vmatpush1.msra.mxu0 0.0
        %1076 = vmatprep.subr.mxu0 0.0
        %1077 = vmatpush1.msra.mxu0 0.0
        %1078 = vmatprep.subr.mxu0 0.0
        %1079 = vmatpush1.msra.mxu0 0.0
        %1080 = vmatprep.subr.mxu0 0.0
        %1081 = vmatpush1.msra.mxu0 0.0
        %1082 = vmatprep.subr.mxu0 0.0
        %1083 = vmatpush1.msra.mxu0 0.0
        %1084 = vmatprep.subr.mxu0 0.0
        %1085 = vmatpush1.msra.mxu0 0.0
        %1086 = vmatprep.subr.mxu0 0.0
        %1087 = vmatpush1.msra.mxu0 0.0
        %1088 = vmatprep.subr.mxu0 0.0
        %1089 = vmatpush1.msra.mxu0 0.0
        %1090 = vmatprep.subr.mxu0 0.0
        %1091 = vmatpush1.msra.mxu0 0.0
        %1092 = vmatprep.subr.mxu0 0.0
        %1093 = vmatpush1.msra.mxu0 0.0
        %1094 = vmatprep.subr.mxu0 0.0
        %1095 = vmatpush1.msra.mxu0 0.0
        %1096 = vmatprep.subr.mxu0 0.0
        %1097 = vmatpush1.msra.mxu0 0.0
        %1098 = vmatprep.subr.mxu0 0.0
        %1099 = vmatpush1.msra.mxu0 0.0
        %1100 = vmatprep.subr.mxu0 0.0
        %1101 = vmatpush1.msra.mxu0 0.0
        %1102 = vmatprep.subr.mxu0 0.0
        %1103 = vmatpush1.msra.mxu0 0.0
        %1104 = vmatprep.subr.mxu0 0.0
        %1105 = vmatpush1.msra.mxu0 0.0
        %1106 = vmatprep.subr.mxu0 0.0
        %1107 = vmatpush1.msra.mxu0 0.0
        %1108 = vmatprep.subr.mxu0 0.0
        %1109 = vmatpush1.msra.mxu0 0.0
        %1110 = vmatprep.subr.mxu0 0.0
        %1111 = vmatpush1.msra.mxu0 0.0
        %1112 = vmatprep.subr.mxu0 0.0
        %1113 = vmatpush1.msra.mxu0 0.0
        %1114 = vmatprep.mubr.f32.mxu0 0.0
        %1115 = vmatmul.mubr.f32.gmra.mrb[0].mxu0 %v1045
        %v1116 = vpop.f32.mrb[0].mxu0
        %v1117 = vadd.f32 0.0, %v1116
        %v1118 = vpop.f32.mrb[0].mxu0
        %1119 = vmatprep.mubr.f32.mxu0 0.0
        %1120 = vmatmul.mubr.f32.gmra.mrb[0].mxu0 %v1048
        %v1121 = vpop.f32.mrb[0].mxu0
        %v1122 = vadd.f32 0.0, %v1121
        %v1123 = vpop.f32.mrb[0].mxu0
        %1124 = vdwg.mxu0
        %v1126 = vsel %vm721, %v835, 0
        %v1129 = vsel %vm721, %v837, 0
        %1131 = vmatprep.subr.mxu0 0.0
        %1132 = vmatpush1.msra.mxu0 %v959
        %1133 = vmatprep.subr.mxu0 0.0
        %1134 = vmatpush1.msra.mxu0 %v960
        %1135 = vmatprep.subr.mxu0 0.0
        %1136 = vmatpush1.msra.mxu0 0.0
        %1137 = vmatprep.subr.mxu0 0.0
        %1138 = vmatpush1.msra.mxu0 0.0
        %1139 = vmatprep.subr.mxu0 0.0
        %1140 = vmatpush1.msra.mxu0 0.0
        %1141 = vmatprep.subr.mxu0 0.0
        %1142 = vmatpush1.msra.mxu0 0.0
        %1143 = vmatprep.subr.mxu0 0.0
        %1144 = vmatpush1.msra.mxu0 0.0
        %1145 = vmatprep.subr.mxu0 0.0
        %1146 = vmatpush1.msra.mxu0 0.0
        %1147 = vmatprep.subr.mxu0 0.0
        %1148 = vmatpush1.msra.mxu0 0.0
        %1149 = vmatprep.subr.mxu0 0.0
        %1150 = vmatpush1.msra.mxu0 0.0
        %1151 = vmatprep.subr.mxu0 0.0
        %1152 = vmatpush1.msra.mxu0 0.0
        %1153 = vmatprep.subr.mxu0 0.0
        %1154 = vmatpush1.msra.mxu0 0.0
        %1155 = vmatprep.subr.mxu0 0.0
        %1156 = vmatpush1.msra.mxu0 0.0
        %1157 = vmatprep.subr.mxu0 0.0
        %1158 = vmatpush1.msra.mxu0 0.0
        %1159 = vmatprep.subr.mxu0 0.0
        %1160 = vmatpush1.msra.mxu0 0.0
        %1161 = vmatprep.subr.mxu0 0.0
        %1162 = vmatpush1.msra.mxu0 0.0
        %1163 = vmatprep.subr.mxu0 0.0
        %1164 = vmatpush1.msra.mxu0 0.0
        %1165 = vmatprep.subr.mxu0 0.0
        %1166 = vmatpush1.msra.mxu0 0.0
        %1167 = vmatprep.subr.mxu0 0.0
        %1168 = vmatpush1.msra.mxu0 0.0
        %1169 = vmatprep.subr.mxu0 0.0
        %1170 = vmatpush1.msra.mxu0 0.0
        %1171 = vmatprep.subr.mxu0 0.0
        %1172 = vmatpush1.msra.mxu0 0.0
        %1173 = vmatprep.subr.mxu0 0.0
        %1174 = vmatpush1.msra.mxu0 0.0
        %1175 = vmatprep.subr.mxu0 0.0
        %1176 = vmatpush1.msra.mxu0 0.0
        %1177 = vmatprep.subr.mxu0 0.0
        %1178 = vmatpush1.msra.mxu0 0.0
        %1179 = vmatprep.subr.mxu0 0.0
        %1180 = vmatpush1.msra.mxu0 0.0
        %1181 = vmatprep.subr.mxu0 0.0
        %1182 = vmatpush1.msra.mxu0 0.0
        %1183 = vmatprep.subr.mxu0 0.0
        %1184 = vmatpush1.msra.mxu0 0.0
        %1185 = vmatprep.subr.mxu0 0.0
        %1186 = vmatpush1.msra.mxu0 0.0
        %1187 = vmatprep.subr.mxu0 0.0
        %1188 = vmatpush1.msra.mxu0 0.0
        %1189 = vmatprep.subr.mxu0 0.0
        %1190 = vmatpush1.msra.mxu0 0.0
        %1191 = vmatprep.subr.mxu0 0.0
        %1192 = vmatpush1.msra.mxu0 0.0
        %1193 = vmatprep.subr.mxu0 0.0
        %1194 = vmatpush1.msra.mxu0 0.0
        %1195 = vmatprep.mubr.f32.mxu0 0.0
        %1196 = vmatmul.mubr.f32.gmra.mrb[0].mxu0 %v1126
        %v1197 = vpop.f32.mrb[0].mxu0
        %v1198 = vadd.f32 0.0, %v1197
        %v1199 = vpop.f32.mrb[0].mxu0
        %1200 = vmatprep.mubr.f32.mxu0 0.0
        %1201 = vmatmul.mubr.f32.gmra.mrb[0].mxu0 %v1129
        %v1202 = vpop.f32.mrb[0].mxu0
        %v1203 = vadd.f32 0.0, %v1202
        %v1204 = vpop.f32.mrb[0].mxu0
        %1205 = vdwg.mxu0
        %v1207 = vsel %vm721, %v839, 0
        %v1210 = vsel %vm721, %v841, 0
        %1212 = vmatprep.subr.mxu0 0.0
        %1213 = vmatpush1.msra.mxu0 %v961
        %1214 = vmatprep.subr.mxu0 0.0
        %1215 = vmatpush1.msra.mxu0 %v962
        %1216 = vmatprep.subr.mxu0 0.0
        %1217 = vmatpush1.msra.mxu0 0.0
        %1218 = vmatprep.subr.mxu0 0.0
        %1219 = vmatpush1.msra.mxu0 0.0
        %1220 = vmatprep.subr.mxu0 0.0
        %1221 = vmatpush1.msra.mxu0 0.0
        %1222 = vmatprep.subr.mxu0 0.0
        %1223 = vmatpush1.msra.mxu0 0.0
        %1224 = vmatprep.subr.mxu0 0.0
        %1225 = vmatpush1.msra.mxu0 0.0
        %1226 = vmatprep.subr.mxu0 0.0
        %1227 = vmatpush1.msra.mxu0 0.0
        %1228 = vmatprep.subr.mxu0 0.0
        %1229 = vmatpush1.msra.mxu0 0.0
        %1230 = vmatprep.subr.mxu0 0.0
        %1231 = vmatpush1.msra.mxu0 0.0
        %1232 = vmatprep.subr.mxu0 0.0
        %1233 = vmatpush1.msra.mxu0 0.0
        %1234 = vmatprep.subr.mxu0 0.0
        %1235 = vmatpush1.msra.mxu0 0.0
        %1236 = vmatprep.subr.mxu0 0.0
        %1237 = vmatpush1.msra.mxu0 0.0
        %1238 = vmatprep.subr.mxu0 0.0
        %1239 = vmatpush1.msra.mxu0 0.0
        %1240 = vmatprep.subr.mxu0 0.0
        %1241 = vmatpush1.msra.mxu0 0.0
        %1242 = vmatprep.subr.mxu0 0.0
        %1243 = vmatpush1.msra.mxu0 0.0
        %1244 = vmatprep.subr.mxu0 0.0
        %1245 = vmatpush1.msra.mxu0 0.0
        %1246 = vmatprep.subr.mxu0 0.0
        %1247 = vmatpush1.msra.mxu0 0.0
        %1248 = vmatprep.subr.mxu0 0.0
        %1249 = vmatpush1.msra.mxu0 0.0
        %1250 = vmatprep.subr.mxu0 0.0
        %1251 = vmatpush1.msra.mxu0 0.0
        %1252 = vmatprep.subr.mxu0 0.0
        %1253 = vmatpush1.msra.mxu0 0.0
        %1254 = vmatprep.subr.mxu0 0.0
        %1255 = vmatpush1.msra.mxu0 0.0
        %1256 = vmatprep.subr.mxu0 0.0
        %1257 = vmatpush1.msra.mxu0 0.0
        %1258 = vmatprep.subr.mxu0 0.0
        %1259 = vmatpush1.msra.mxu0 0.0
        %1260 = vmatprep.subr.mxu0 0.0
        %1261 = vmatpush1.msra.mxu0 0.0
        %1262 = vmatprep.subr.mxu0 0.0
        %1263 = vmatpush1.msra.mxu0 0.0
        %1264 = vmatprep.subr.mxu0 0.0
        %1265 = vmatpush1.msra.mxu0 0.0
        %1266 = vmatprep.subr.mxu0 0.0
        %1267 = vmatpush1.msra.mxu0 0.0
        %1268 = vmatprep.subr.mxu0 0.0
        %1269 = vmatpush1.msra.mxu0 0.0
        %1270 = vmatprep.subr.mxu0 0.0
        %1271 = vmatpush1.msra.mxu0 0.0
        %1272 = vmatprep.subr.mxu0 0.0
        %1273 = vmatpush1.msra.mxu0 0.0
        %1274 = vmatprep.subr.mxu0 0.0
        %1275 = vmatpush1.msra.mxu0 0.0
        %1276 = vmatprep.mubr.f32.mxu0 0.0
        %1277 = vmatmul.mubr.f32.gmra.mrb[0].mxu0 %v1207
        %v1278 = vpop.f32.mrb[0].mxu0
        %v1279 = vadd.f32 0.0, %v1278
        %v1280 = vpop.f32.mrb[0].mxu0
        %1281 = vmatprep.mubr.f32.mxu0 0.0
        %1282 = vmatmul.mubr.f32.gmra.mrb[0].mxu0 %v1210
        %v1283 = vpop.f32.mrb[0].mxu0
        %v1284 = vadd.f32 0.0, %v1283
        %v1285 = vpop.f32.mrb[0].mxu0
        %1286 = vdwg.mxu0
        %v1287 = vadd.f32 %v947, %v1036
        %v1288 = vadd.f32 %v948, %v1041
        %v1289 = vadd.f32 %v949, %v1117
        %v1290 = vadd.f32 %v950, %v1122
        %v1291 = vadd.f32 %v951, %v1198
        %v1292 = vadd.f32 %v952, %v1203
        %v1293 = vadd.f32 %v953, %v1279
        %v1294 = vadd.f32 %v954, %v1284
        %1295 = vst.msk [vmem:[#allocation4] sm:$0xff] %vm364, %v1287
        %1296 = vst.msk [vmem:[#allocation4 + $0x8] sm:$0xff] %vm364, %v1288
        %1297 = vst.msk [vmem:[#allocation4 + $0x10] sm:$0xff] %vm364, %v1289
        %1298 = vst.msk [vmem:[#allocation4 + $0x18] sm:$0xff] %vm364, %v1290
        %1299 = vst.msk [vmem:[#allocation4 + $0x20] sm:$0xff] %vm364, %v1291
        %1300 = vst.msk [vmem:[#allocation4 + $0x28] sm:$0xff] %vm364, %v1292
        %1301 = vst.msk [vmem:[#allocation4 + $0x30] sm:$0xff] %vm364, %v1293
        %1302 = vst.msk [vmem:[#allocation4 + $0x38] sm:$0xff] %vm364, %v1294
        %1303 = vst.msk [vmem:[#allocation2] sm:$0xff] %vm890, %v746
        %1304 = vst.msk [vmem:[#allocation2 + $0x8] sm:$0xff] %vm890, %v747
        %1305 = vst.msk [vmem:[#allocation2 + $0x10] sm:$0xff] %vm890, %v748
        %1306 = vst.msk [vmem:[#allocation2 + $0x18] sm:$0xff] %vm890, %v749
        %1307 = vst.msk [vmem:[#allocation2 + $0x20] sm:$0xff] %vm890, %v750
        %1308 = vst.msk [vmem:[#allocation2 + $0x28] sm:$0xff] %vm890, %v751
        %1309 = vst.msk [vmem:[#allocation2 + $0x30] sm:$0xff] %vm890, %v752
        %1310 = vst.msk [vmem:[#allocation2 + $0x38] sm:$0xff] %vm890, %v753
        // Predicated region
        $region49: #{tpu_custom_call.1} parent=31 // pred_check
          %p1311 = pneg %p310
        $region50: #{tpu_custom_call.1} parent=31 // pred_check_branch
          %1313 = sbr.rel (%p1311) target = $region52
        $region51: #{tpu_custom_call.1} parent=31 // pred_region
          %v1314 = vld [vmem:[#allocation4] sm:$0xff]
          %v1315 = vld [vmem:[#allocation4 + $0x8] sm:$0xff]
          %v1316 = vld [vmem:[#allocation4 + $0x10] sm:$0xff]
          %v1317 = vld [vmem:[#allocation4 + $0x18] sm:$0xff]
          %v1318 = vld [vmem:[#allocation4 + $0x20] sm:$0xff]
          %v1319 = vld [vmem:[#allocation4 + $0x28] sm:$0xff]
          %v1320 = vld [vmem:[#allocation4 + $0x30] sm:$0xff]
          %v1321 = vld [vmem:[#allocation4 + $0x38] sm:$0xff]
          %v1322 = vld [vmem:[#allocation3] sm:$0xff]
          %v1323 = vld [vmem:[#allocation3 + $0x8] sm:$0xff]
          %v1324 = vld [vmem:[#allocation3 + $0x10] sm:$0xff]
          %v1325 = vld [vmem:[#allocation3 + $0x18] sm:$0xff]
          %v1326 = vld [vmem:[#allocation3 + $0x20] sm:$0xff]
          %v1327 = vld [vmem:[#allocation3 + $0x28] sm:$0xff]
          %v1328 = vld [vmem:[#allocation3 + $0x30] sm:$0xff]
          %v1329 = vld [vmem:[#allocation3 + $0x38] sm:$0xff]
          %1331 = vset.pattern.permute.xlu0 0
          %1332 = vperm.xlu0 %1331, %v1322
          %v1333 = vpop.permute.xlu0 %1332
          %1336 = vset.pattern.permute.xlu0 0
          %1337 = vperm.xlu0 %1336, %v1323
          %v1338 = vpop.permute.xlu0 %1337
          %1341 = vset.pattern.permute.xlu0 0
          %1342 = vperm.xlu0 %1341, %v1324
          %v1343 = vpop.permute.xlu0 %1342
          %1346 = vset.pattern.permute.xlu0 0
          %1347 = vperm.xlu0 %1346, %v1325
          %v1348 = vpop.permute.xlu0 %1347
          %1351 = vset.pattern.permute.xlu0 0
          %1352 = vperm.xlu0 %1351, %v1326
          %v1353 = vpop.permute.xlu0 %1352
          %1356 = vset.pattern.permute.xlu0 0
          %1357 = vperm.xlu0 %1356, %v1327
          %v1358 = vpop.permute.xlu0 %1357
          %1361 = vset.pattern.permute.xlu0 0
          %1362 = vperm.xlu0 %1361, %v1328
          %v1363 = vpop.permute.xlu0 %1362
          %1366 = vset.pattern.permute.xlu0 0
          %1367 = vperm.xlu0 %1366, %v1329
          %v1368 = vpop.permute.xlu0 %1367
          %v1370 = vrcp.pop %v1333
          %v1371 = vmul.f32 %v1314, %v1370
          %v1372 = vrcp.pop %v1338
          %v1373 = vmul.f32 %v1315, %v1372
          %v1374 = vrcp.pop %v1343
          %v1375 = vmul.f32 %v1316, %v1374
          %v1376 = vrcp.pop %v1348
          %v1377 = vmul.f32 %v1317, %v1376
          %v1378 = vrcp.pop %v1353
          %v1379 = vmul.f32 %v1318, %v1378
          %v1380 = vrcp.pop %v1358
          %v1381 = vmul.f32 %v1319, %v1380
          %v1382 = vrcp.pop %v1363
          %v1383 = vmul.f32 %v1320, %v1382
          %v1384 = vrcp.pop %v1368
          %v1385 = vmul.f32 %v1321, %v1384
          %1386 = vst.msk [vmem:[%s301] sm:$0xff] %vm364, %v1371
          %1387 = vst.msk [vmem:[%s301 + $0x8] sm:$0xff] %vm364, %v1373
          %1388 = vst.msk [vmem:[%s301 + $0x10] sm:$0xff] %vm364, %v1375
          %1389 = vst.msk [vmem:[%s301 + $0x18] sm:$0xff] %vm364, %v1377
          %1390 = vst.msk [vmem:[%s301 + $0x20] sm:$0xff] %vm364, %v1379
          %1391 = vst.msk [vmem:[%s301 + $0x28] sm:$0xff] %vm364, %v1381
          %1392 = vst.msk [vmem:[%s301 + $0x30] sm:$0xff] %vm364, %v1383
          %1393 = vst.msk [vmem:[%s301 + $0x38] sm:$0xff] %vm364, %v1385
        $region52: #{tpu_custom_call.1} parent=31 // pred_fallthru
          _
        %s1394 = sand.u32 %s136, 1
        %s1395 = scalar_lea.sflag [#allocation7], %s1394
        %s1396 = sand.u32 %s136, 1
        %s1397 = smul.addr %s1396, 64
        %s1398 = scalar_lea.vmem [#allocation11], %s1397
        // Predicated region
        $region53: #{tpu_custom_call.1} parent=31 // pred_check
          %p1399 = pneg %p146
        $region54: #{tpu_custom_call.1} parent=31 // pred_check_branch
          %1401 = sbr.rel (%p1399) target = $region56
        $region55: #{tpu_custom_call.1} parent=31 // pred_region
          %s1402 = smul.u32 4, %s28
          %s1403 = smul.u32 2, %s29
          %s1405 = ssub.s32 1024, 1024
          %1406 = vsyncadd %s1395, %s1405
          %s1407 = smul.addr %s1402, 2
          %s1408 = sadd.s32 %s1403, %s1407
          %s1409 = smul.addr %s1408, 128
          %s1410 = scalar_lea.hbm %s3, %s1409
          %s1411 = sshll.u32 %s1398, 4
          %s1412 = int_to_ptr.vmem [resolvable:$true] %s1411
          %1417 = dma.vmem_to_hbm [thread:$0]  %s1412, 1024, %s1410, %s1395, 128, 128, 8
        $region56: #{tpu_custom_call.1} parent=31 // pred_fallthru
          _
      $region32: #{tpu_custom_call.1} parent=5 // pred_fallthru
        _
      %p1418 = scmp.le.s32.totalorder 2, %s18
      // Predicated region
      $region57: #{tpu_custom_call.1} parent=5 // pred_check
        %p1419 = pneg %p1418
      $region58: #{tpu_custom_call.1} parent=5 // pred_check_branch
        %1421 = sbr.rel (%p1419) target = $region60
      $region59: #{tpu_custom_call.1} parent=5 // pred_region
        %s1422 = ssub.s32 %s18, 2
        // Predicated region
        $region61: #{tpu_custom_call.1} parent=59 // pred_check
          %p1423 = pneg %p152
        $region62: #{tpu_custom_call.1} parent=59 // pred_check_branch
          %1425 = sbr.rel (%p1423) target = $region64
        $region63: #{tpu_custom_call.1} parent=59 // pred_region
          %s1426 = sand.u32 %s137, 1
          %s1427 = scalar_lea.sflag [#allocation7], %s1426
          %s1428 = sand.u32 %s137, 1
          %s1429 = smul.addr %s1428, 64
          %s1430 = scalar_lea.vmem [#allocation11], %s1429
          %1431 = dma.done %s1427, 1024
        $region64: #{tpu_custom_call.1} parent=59 // pred_fallthru
          _
      $region60: #{tpu_custom_call.1} parent=5 // pred_fallthru
        _
    $region6: #{tpu_custom_call.1} parent=1 // loop_footer
      %s22 = sadd.s32 1, %s18
    $region7: #{tpu_custom_call.1} parent=1 // loop_footer_branch
      %17 = sbr.rel target = $region3
    $region8: #{tpu_custom_call.1} parent=1 // loop_exit
      _
    %1432 = vsyncpa [#allocation6], 1
    %s1433 = scalar_lea.sflag [#allocation6], 1
    %1434 = vsyncpa %s1433, 1
    %1435 = vsyncpa [#allocation9], 1
    %s1436 = scalar_lea.sflag [#allocation9], 1
    %1437 = vsyncpa %s1436, 1
    %1438 = vsyncpa [#allocation7], 1
    %s1439 = scalar_lea.sflag [#allocation7], 1
    %1440 = vsyncpa %s1439, 1

</llo_original>
